<compile_context>
chip_gen: v7x
topology: tpu7x:2x2x1
jax: 0.10.0
libtpu: 0.0.40
codegen_flags: <defaults>
</compile_context>

<pallas_src>
import functools

import jax
import jax.numpy as jnp
from jax.experimental import pallas as pl
from jax.experimental.pallas import tpu as pltpu


def conv_bn_silu_kernel(x_ref, w_ref, bias_ref, o_ref, *, N, H, Hp, K, precision):
    # x_ref:    (N*Hp, LANE_IN)     spatially padded input rows, lane-padded to 128
    # w_ref:    (K*LANE_IN, W*C2)   block-structured conv weights (BN scale folded in)
    # bias_ref: (1, W*C2)           folded BN bias, tiled to lane layout
    # o_ref:    (N*H, W*C2)         lane-dense output slab
    x = x_ref[...]

    # im2col over the vertical taps only (the horizontal kw offsets live in the
    # weight matrix): K sublane-shifted, full-width (128-lane aligned) windows per
    # batch element, concatenated along lanes; batch elements stacked along M.
    rows = []
    for n in range(N):
        base = n * Hp
        taps = [x[base + kh:base + kh + H, :] for kh in range(K)]
        rows.append(jnp.concatenate(taps, axis=-1))                    # (H, K*LANE_IN)
    patches = rows[0] if N == 1 else jnp.concatenate(rows, axis=0)     # (N*H, K*LANE_IN)

    # Single MXU contraction -> lane-dense f32 accumulator.
    acc = jnp.dot(patches, w_ref[...],
                  preferred_element_type=jnp.float32,
                  precision=precision)                                 # (N*H, W*C2)

    # BatchNorm (scale already folded into the weights) + SiLU, in f32.
    y = acc + bias_ref[...]
    o_ref[...] = (y * jax.nn.sigmoid(y)).astype(o_ref.dtype)


def conv_bn_silu(x_nchw, weight, gamma, beta, running_mean, running_var,
                 *, stride=1, eps=1e-5):
    """Forward of Conv module (conv -> bn(eval) -> SiLU). x_nchw: (N, C1, H, W)."""
    assert stride == 1, "this kernel implements the s=1 'same' case"
    N, C1, H, W = x_nchw.shape
    C2, C1w, K, Kw = weight.shape
    assert C1w == C1 and Kw == K, "groups=1, square kernel expected"
    assert K % 2 == 1, "autopad 'same' path implemented for odd k"
    pad = K // 2                                   # autopad(k) with d=1, p=None
    Hp, Wp = H + 2 * pad, W + 2 * pad
    dtype = x_nchw.dtype
    itemsize = jnp.dtype(dtype).itemsize

    lane_in = ((Wp * C1 + 127) // 128) * 128       # pad input lane dim to 128
    lane_out = W * C2                              # 128 here: unmasked stores

    # --- layout plumbing in plain JAX (runs once / cheap at these sizes) ---
    # NCHW -> NHWC -> spatial pad -> flatten (W, C1) onto lanes -> pad lanes to 128
    # -> stack batches along rows.
    x_nhwc = jnp.transpose(x_nchw, (0, 2, 3, 1))                          # (N,H,W,C1)
    x_pad = jnp.pad(x_nhwc, ((0, 0), (pad, pad), (pad, pad), (0, 0)))     # (N,Hp,Wp,C1)
    x2d = x_pad.reshape(N, Hp, Wp * C1)
    x2d = jnp.pad(x2d, ((0, 0), (0, 0), (0, lane_in - Wp * C1)))
    x2d = x2d.reshape(N * Hp, lane_in)                                    # (N*Hp, 128)

    # Folded BN params (eval mode): scale goes into the weights, bias stays.
    scale = (gamma.astype(jnp.float32)
             / jnp.sqrt(running_var.astype(jnp.float32) + eps))           # (C2,)
    bias = beta.astype(jnp.float32) - running_mean.astype(jnp.float32) * scale
    scale_cols = jnp.tile(scale, W)                                       # (W*C2,)
    bias_t = jnp.tile(bias, W).reshape(1, lane_out)

    # Block-structured weight with the horizontal kw offsets baked in:
    #   B[(kh, wp, c), (w', d)] = weight[d, c, kh, wp - w'] * scale[d]
    #                             if 0 <= wp - w' < K else 0
    w_taps = jnp.transpose(weight, (2, 3, 1, 0)).astype(jnp.float32)      # (K,K,C1,C2)
    shift = (jnp.arange(Wp)[None, :, None]
             == (jnp.arange(W)[None, None, :]
                 + jnp.arange(K)[:, None, None])).astype(jnp.float32)     # (K,Wp,W)
    B = jnp.einsum("kxw,hkcd->hxcwd", shift, w_taps)                      # (K,Wp,C1,W,C2)
    B = B.reshape(K, Wp * C1, lane_out) * scale_cols[None, None, :]
    B = jnp.pad(B, ((0, 0), (0, lane_in - Wp * C1), (0, 0)))              # zero pad rows
    B = B.reshape(K * lane_in, lane_out).astype(dtype)                    # (384, 128)

    # Mosaic dot supports DEFAULT / HIGHEST only; keep exact f32, native bf16.
    precision = (jax.lax.Precision.HIGHEST if dtype == jnp.float32 else None)
    kernel = functools.partial(conv_bn_silu_kernel,
                               N=N, H=H, Hp=Hp, K=K, precision=precision)

    cost = pl.CostEstimate(
        flops=2 * (N * H) * (K * lane_in) * lane_out,       # FLOPs actually issued
        transcendentals=N * H * lane_out,                   # sigmoid
        bytes_accessed=(N * Hp * lane_in * itemsize
                        + (K * lane_in) * lane_out * itemsize
                        + lane_out * 4
                        + N * H * lane_out * itemsize))

    out2d = pl.pallas_call(
        kernel,
        out_shape=jax.ShapeDtypeStruct((N * H, lane_out), dtype),
        grid_spec=pltpu.PrefetchScalarGridSpec(
            num_scalar_prefetch=0,
            grid=(1,),                               # one step: batch lives in M
            in_specs=[
                pl.BlockSpec((N * Hp, lane_in), lambda i: (0, 0)),
                pl.BlockSpec((K * lane_in, lane_out), lambda i: (0, 0)),
                pl.BlockSpec((1, lane_out), lambda i: (0, 0)),
            ],
            out_specs=pl.BlockSpec((N * H, lane_out), lambda i: (0, 0)),
        ),
        compiler_params=pltpu.CompilerParams(
            dimension_semantics=("arbitrary",),
            vmem_limit_bytes=4 * 1024 * 1024),       # real footprint is < 1 MiB
        cost_estimate=cost,
    )(x2d, B, bias_t)

    # (N*H, W*C2) -> (N, H, W, C2) -> NCHW (metadata reshape + one transpose).
    return jnp.transpose(out2d.reshape(N, H, W, C2), (0, 3, 1, 2))


def reference(x_nchw, weight, gamma, beta, running_mean, running_var, eps=1e-5):
    """Pure-JAX reference matching PyTorch Conv2d(same, bias=False)+BN(eval)+SiLU."""
    K = weight.shape[-1]
    pad = K // 2
    y = jax.lax.conv_general_dilated(
        x_nchw.astype(jnp.float32), weight.astype(jnp.float32),
        window_strides=(1, 1), padding=((pad, pad), (pad, pad)),
        dimension_numbers=("NCHW", "OIHW", "NCHW"),
        precision=jax.lax.Precision.HIGHEST)
    scale = gamma / jnp.sqrt(running_var + eps)
    bias = beta - running_mean * scale
    y = y * scale[None, :, None, None] + bias[None, :, None, None]
    return y * jax.nn.sigmoid(y)


if __name__ == "__main__":
    # Module config: Conv(c1=4, c2=8, k=3, s=1) -> autopad gives p=1 ('same')
    N, C1, H, W = 2, 4, 16, 16
    C2, K = 8, 3

    key = jax.random.PRNGKey(0)
    kx, kw, kg, kb, km, kv = jax.random.split(key, 6)
    x = jax.random.normal(kx, (N, C1, H, W), dtype=jnp.float32)
    weight = 0.1 * jax.random.normal(kw, (C2, C1, K, K), dtype=jnp.float32)
    gamma = 1.0 + 0.1 * jax.random.normal(kg, (C2,), dtype=jnp.float32)
    beta = 0.1 * jax.random.normal(kb, (C2,), dtype=jnp.float32)
    running_mean = 0.1 * jax.random.normal(km, (C2,), dtype=jnp.float32)
    running_var = jnp.abs(1.0 + 0.1 * jax.random.normal(kv, (C2,), dtype=jnp.float32))

    out = conv_bn_silu(x, weight, gamma, beta, running_mean, running_var)
    out = jax.block_until_ready(out)

    ref = reference(x, weight, gamma, beta, running_mean, running_var)
    assert out.shape == (N, C2, H, W), out.shape
    assert jnp.allclose(out, ref, atol=1e-4, rtol=1e-4), float(
        jnp.max(jnp.abs(out - ref)))
    print("KERNEL_OK")
</pallas_src>

<mosaic_0001>
module attributes {stable_mosaic.version = 11 : i64} {
  func.func @conv_bn_silu_kernel(%arg0: i32, %arg1: memref<36x128xf32, #tpu.memory_space<vmem>>, %arg2: memref<384x128xf32, #tpu.memory_space<vmem>>, %arg3: memref<1x128xf32, #tpu.memory_space<vmem>>, %arg4: memref<32x128xf32, #tpu.memory_space<vmem>>) attributes {dimension_semantics = [#tpu.dimension_semantics<arbitrary>], iteration_bounds = array<i64: 1>, scalar_prefetch = 0 : i64, scratch_operands = 0 : i64, tpu.core_type = #tpu.core_type<tc>, window_params = [{pipeline_mode = #tpu.pipeline_mode<synchronous>, transform_indices = @transform_0, window_bounds = array<i64: 36, 128>}, {pipeline_mode = #tpu.pipeline_mode<synchronous>, transform_indices = @transform_1, window_bounds = array<i64: 384, 128>}, {pipeline_mode = #tpu.pipeline_mode<synchronous>, transform_indices = @transform_2, window_bounds = array<i64: 1, 128>}, {pipeline_mode = #tpu.pipeline_mode<synchronous>, transform_indices = @transform_3, window_bounds = array<i64: 32, 128>}]} {
    %c0 = arith.constant 0 : index
    %c0_0 = arith.constant 0 : index
    %0 = vector.load %arg1[%c0, %c0_0] : memref<36x128xf32, #tpu.memory_space<vmem>>, vector<36x128xf32>
    %1 = vector.extract_strided_slice %0 {offsets = [0, 0], sizes = [16, 128], strides = [1, 1]} : vector<36x128xf32> to vector<16x128xf32>
    %2 = vector.extract_strided_slice %0 {offsets = [1, 0], sizes = [16, 128], strides = [1, 1]} : vector<36x128xf32> to vector<16x128xf32>
    %3 = vector.extract_strided_slice %0 {offsets = [2, 0], sizes = [16, 128], strides = [1, 1]} : vector<36x128xf32> to vector<16x128xf32>
    %4 = tpu.concatenate %1, %2, %3 in 1 : vector<16x128xf32>, vector<16x128xf32>, vector<16x128xf32> -> vector<16x384xf32>
    %5 = vector.extract_strided_slice %0 {offsets = [18, 0], sizes = [16, 128], strides = [1, 1]} : vector<36x128xf32> to vector<16x128xf32>
    %6 = vector.extract_strided_slice %0 {offsets = [19, 0], sizes = [16, 128], strides = [1, 1]} : vector<36x128xf32> to vector<16x128xf32>
    %7 = vector.extract_strided_slice %0 {offsets = [20, 0], sizes = [16, 128], strides = [1, 1]} : vector<36x128xf32> to vector<16x128xf32>
    %8 = tpu.concatenate %5, %6, %7 in 1 : vector<16x128xf32>, vector<16x128xf32>, vector<16x128xf32> -> vector<16x384xf32>
    %9 = tpu.concatenate %4, %8 in 0 : vector<16x384xf32>, vector<16x384xf32> -> vector<32x384xf32>
    %c0_1 = arith.constant 0 : index
    %c0_2 = arith.constant 0 : index
    %10 = vector.load %arg2[%c0_1, %c0_2] : memref<384x128xf32, #tpu.memory_space<vmem>>, vector<384x128xf32>
    %cst = arith.constant dense<0.000000e+00> : vector<32x128xf32>
    %11 = tpu.matmul %9, %10, %cst {dimension_numbers = #tpu.dot_dimension_numbers<[1], [0], [0], [1], [0, 0, 1, 1], [], []>, precision = #tpu.contract_precision<fp32>} : vector<32x384xf32>, vector<384x128xf32>, vector<32x128xf32> -> vector<32x128xf32>
    %c0_3 = arith.constant 0 : index
    %c0_4 = arith.constant 0 : index
    %12 = vector.load %arg3[%c0_3, %c0_4] : memref<1x128xf32, #tpu.memory_space<vmem>>, vector<1x128xf32>
    %13 = vector.broadcast %12 : vector<1x128xf32> to vector<32x128xf32>
    %14 = arith.addf %11, %13 : vector<32x128xf32>
    %15 = arith.negf %14 : vector<32x128xf32>
    %16 = math.exp %15 : vector<32x128xf32>
    %cst_5 = arith.constant 1.000000e+00 : f32
    %17 = vector.broadcast %cst_5 : f32 to vector<32x128xf32>
    %18 = arith.addf %17, %16 : vector<32x128xf32>
    %19 = arith.divf %17, %18 : vector<32x128xf32>
    %20 = arith.mulf %14, %19 : vector<32x128xf32>
    %c0_6 = arith.constant 0 : index
    %c0_7 = arith.constant 0 : index
    %21 = vector.load %arg4[%c0_6, %c0_7] : memref<32x128xf32, #tpu.memory_space<vmem>>, vector<32x128xf32>
    tpu.vector_store %arg4[%c0_6, %c0_7], %20 {strides = array<i32>} : memref<32x128xf32, #tpu.memory_space<vmem>>, vector<32x128xf32>,
    return
  }
  func.func @transform_0(%arg0: i32) -> (i32, i32) {
    %c0_i32 = arith.constant 0 : i32
    %c0_i32_0 = arith.constant 0 : i32
    %c0_i32_1 = arith.constant 0 : i32
    return %c0_i32, %c0_i32_0 : i32, i32
  }
  func.func @transform_1(%arg0: i32) -> (i32, i32) {
    %c0_i32 = arith.constant 0 : i32
    %c0_i32_0 = arith.constant 0 : i32
    %c0_i32_1 = arith.constant 0 : i32
    return %c0_i32, %c0_i32_0 : i32, i32
  }
  func.func @transform_2(%arg0: i32) -> (i32, i32) {
    %c0_i32 = arith.constant 0 : i32
    %c0_i32_0 = arith.constant 0 : i32
    %c0_i32_1 = arith.constant 0 : i32
    return %c0_i32, %c0_i32_0 : i32, i32
  }
  func.func @transform_3(%arg0: i32) -> (i32, i32) {
    %c0_i32 = arith.constant 0 : i32
    %c0_i32_0 = arith.constant 0 : i32
    %c0_i32_1 = arith.constant 0 : i32
    return %c0_i32, %c0_i32_0 : i32, i32
  }
}

</mosaic_0001>

<llo_original>
// kernel: tpu_custom_call.1
$region0: #{tpu_custom_call.1}
  #allocation0 [shape = 'u32[]', space=smem, size = 0x4, offset = 0x4, fixed_abs, tag = 'smem constant byte address 0x4 - core index']
  #allocation1 [shape = 'u32[144,128]{1,0:T(1,128)}', space=vmem, size = 0x12000, scoped, tag = 'internal scratch']
  %s0 = inlined_call_operand.hbm [shape: f32[36,128], index: 0, kind: input, shape index: {}]
  %s1 = inlined_call_operand.hbm [shape: f32[384,128], index: 1, kind: input, shape index: {}]
  %s2 = inlined_call_operand.vmem [shape: f32[1,128], index: 2, kind: input, shape index: {}]
  %s3 = inlined_call_operand.hbm [shape: f32[32,128], index: 3, kind: output, shape index: {}]
  %s4 = sld [smem:[#allocation0]]
  $region30: #{tpu_custom_call.1} parent=0
    _
  %s6 = ssub.s32 1, %s4
  %s7 = scalar_select 0, %s6, %s4
  $region1: #{tpu_custom_call.1} parent=0
    #allocation2 [shape = 'u8[20480]{0}', space=vmem, size = 0x5000, scoped, tag = 'input window, operand 0, single buffered']
    #allocation3 [shape = 's32[1]{0}', space=sflag, size = 0x4, scoped, tag = 'scoped memory for tpu_custom_call.1']
    #allocation4 [shape = 's32[1]{0}', space=sflag, size = 0x4, scoped, tag = 'scoped memory for tpu_custom_call.1']
    #allocation5 [shape = 'u8[196608]{0}', space=vmem, size = 0x30000, scoped, tag = 'input window, operand 1, single buffered']
    #allocation6 [shape = 's32[1]{0}', space=sflag, size = 0x4, scoped, tag = 'scoped memory for tpu_custom_call.1']
    #allocation7 [shape = 'u8[16384]{0}', space=vmem, size = 0x4000, scoped, tag = 'output window, operand 0, single buffered']
    %8 = vsyncpa [#allocation3], 0
    %9 = vsyncpa [#allocation6], 0
    %10 = vsyncpa [#allocation4], 0
    // Predicated region
    $region2: #{tpu_custom_call.1} parent=1 // pred_check
      _
    $region3: #{tpu_custom_call.1} parent=1 // pred_check_branch
      %12 = sbr.rel (0) target = $region5
    $region4: #{tpu_custom_call.1} parent=1 // pred_region
      %s14 = ssub.s32 640, 640
      %15 = vsyncadd [#allocation3], %s14
      %s16 = sshll.u32 [#allocation2], 4
      %s17 = int_to_ptr.vmem [resolvable:$true] %s16
      %22 = dma.hbm_to_vmem [thread:$0]  %s0, 640, %s17, [#allocation3], 128, 128, 8
    $region5: #{tpu_custom_call.1} parent=1 // pred_fallthru
      _
    // Predicated region
    $region6: #{tpu_custom_call.1} parent=1 // pred_check
      _
    $region7: #{tpu_custom_call.1} parent=1 // pred_check_branch
      %24 = sbr.rel (0) target = $region9
    $region8: #{tpu_custom_call.1} parent=1 // pred_region
      %s26 = ssub.s32 6144, 6144
      %27 = vsyncadd [#allocation6], %s26
      %s28 = sshll.u32 [#allocation5], 4
      %s29 = int_to_ptr.vmem [resolvable:$true] %s28
      %34 = dma.hbm_to_vmem [thread:$0]  %s1, 6144, %s29, [#allocation6], 128, 128, 8
    $region9: #{tpu_custom_call.1} parent=1 // pred_fallthru
      _
    // Predicated region
    $region10: #{tpu_custom_call.1} parent=1 // pred_check
      _
    $region11: #{tpu_custom_call.1} parent=1 // pred_check_branch
      %36 = sbr.rel (0) target = $region13
    $region12: #{tpu_custom_call.1} parent=1 // pred_region
      _
    $region13: #{tpu_custom_call.1} parent=1 // pred_fallthru
      _
    // Predicated region
    $region14: #{tpu_custom_call.1} parent=1 // pred_check
      _
    $region15: #{tpu_custom_call.1} parent=1 // pred_check_branch
      %38 = sbr.rel (0) target = $region17
    $region16: #{tpu_custom_call.1} parent=1 // pred_region
      %39 = dma.done [#allocation3], 640
    $region17: #{tpu_custom_call.1} parent=1 // pred_fallthru
      _
    // Predicated region
    $region18: #{tpu_custom_call.1} parent=1 // pred_check
      _
    $region19: #{tpu_custom_call.1} parent=1 // pred_check_branch
      %41 = sbr.rel (0) target = $region21
    $region20: #{tpu_custom_call.1} parent=1 // pred_region
      %42 = dma.done [#allocation6], 6144
    $region21: #{tpu_custom_call.1} parent=1 // pred_fallthru
      _
    %v43 = vld [vmem:[#allocation2] sm:$0xff]
    %v44 = vld [vmem:[#allocation2 + $0x8] sm:$0xff]
    %v45 = vld [vmem:[#allocation2 + $0x10] sm:$0xff]
    %v46 = vld [vmem:[#allocation2 + $0x18] sm:$0xff]
    %v47 = vld [vmem:[#allocation2 + $0x20] sm:$0xf]
    %vm51 = vcmask 1046528
    %v52 = vrot.slane %v43, 1
    %v53 = vrot.slane %v44, 1
    %v54 = vsel %vm51, %v52, %v53
    %v55 = vrot.slane %v45, 1
    %v56 = vsel %vm51, %v53, %v55
    %vm59 = vcmask 1045504
    %v60 = vrot.slane %v43, 2
    %v61 = vrot.slane %v44, 2
    %v62 = vsel %vm59, %v60, %v61
    %v63 = vrot.slane %v45, 2
    %v64 = vsel %vm59, %v61, %v63
    %v69 = vrot.slane %v46, 1
    %v70 = vsel %vm51, %v55, %v69
    %v71 = vrot.slane %v47, 1
    %v72 = vsel %vm51, %v69, %v71
    %v73 = vrot.slane %v46, 2
    %v74 = vsel %vm59, %v63, %v73
    %v75 = vrot.slane %v47, 2
    %v76 = vsel %vm59, %v73, %v75
    %v77 = vrot.slane %v70, 2
    %v78 = vrot.slane %v72, 2
    %v79 = vsel %vm59, %v77, %v78
    %v80 = vrot.slane %v74, 2
    %v81 = vrot.slane %v76, 2
    %v82 = vsel %vm59, %v80, %v81
    %v83 = vrot.slane %v71, 2
    %v84 = vsel %vm59, %v78, %v83
    %v85 = vrot.slane %v75, 2
    %v86 = vsel %vm59, %v81, %v85
    %v93 = vld [vmem:[#allocation5] sm:$0xff]
    %v94 = vld [vmem:[#allocation5 + $0x8] sm:$0xff]
    %v95 = vld [vmem:[#allocation5 + $0x10] sm:$0xff]
    %v96 = vld [vmem:[#allocation5 + $0x18] sm:$0xff]
    %v97 = vld [vmem:[#allocation5 + $0x20] sm:$0xff]
    %v98 = vld [vmem:[#allocation5 + $0x28] sm:$0xff]
    %v99 = vld [vmem:[#allocation5 + $0x30] sm:$0xff]
    %v100 = vld [vmem:[#allocation5 + $0x38] sm:$0xff]
    %v101 = vld [vmem:[#allocation5 + $0x40] sm:$0xff]
    %v102 = vld [vmem:[#allocation5 + $0x48] sm:$0xff]
    %v103 = vld [vmem:[#allocation5 + $0x50] sm:$0xff]
    %v104 = vld [vmem:[#allocation5 + $0x58] sm:$0xff]
    %v105 = vld [vmem:[#allocation5 + $0x60] sm:$0xff]
    %v106 = vld [vmem:[#allocation5 + $0x68] sm:$0xff]
    %v107 = vld [vmem:[#allocation5 + $0x70] sm:$0xff]
    %v108 = vld [vmem:[#allocation5 + $0x78] sm:$0xff]
    %v109 = vld [vmem:[#allocation5 + $0x80] sm:$0xff]
    %v110 = vld [vmem:[#allocation5 + $0x88] sm:$0xff]
    %v111 = vld [vmem:[#allocation5 + $0x90] sm:$0xff]
    %v112 = vld [vmem:[#allocation5 + $0x98] sm:$0xff]
    %v113 = vld [vmem:[#allocation5 + $0xa0] sm:$0xff]
    %v114 = vld [vmem:[#allocation5 + $0xa8] sm:$0xff]
    %v115 = vld [vmem:[#allocation5 + $0xb0] sm:$0xff]
    %v116 = vld [vmem:[#allocation5 + $0xb8] sm:$0xff]
    %v117 = vld [vmem:[#allocation5 + $0xc0] sm:$0xff]
    %v118 = vld [vmem:[#allocation5 + $0xc8] sm:$0xff]
    %v119 = vld [vmem:[#allocation5 + $0xd0] sm:$0xff]
    %v120 = vld [vmem:[#allocation5 + $0xd8] sm:$0xff]
    %v121 = vld [vmem:[#allocation5 + $0xe0] sm:$0xff]
    %v122 = vld [vmem:[#allocation5 + $0xe8] sm:$0xff]
    %v123 = vld [vmem:[#allocation5 + $0xf0] sm:$0xff]
    %v124 = vld [vmem:[#allocation5 + $0xf8] sm:$0xff]
    %v125 = vld [vmem:[#allocation5 + $0x100] sm:$0xff]
    %v126 = vld [vmem:[#allocation5 + $0x108] sm:$0xff]
    %v127 = vld [vmem:[#allocation5 + $0x110] sm:$0xff]
    %v128 = vld [vmem:[#allocation5 + $0x118] sm:$0xff]
    %v129 = vld [vmem:[#allocation5 + $0x120] sm:$0xff]
    %v130 = vld [vmem:[#allocation5 + $0x128] sm:$0xff]
    %v131 = vld [vmem:[#allocation5 + $0x130] sm:$0xff]
    %v132 = vld [vmem:[#allocation5 + $0x138] sm:$0xff]
    %v133 = vld [vmem:[#allocation5 + $0x140] sm:$0xff]
    %v134 = vld [vmem:[#allocation5 + $0x148] sm:$0xff]
    %v135 = vld [vmem:[#allocation5 + $0x150] sm:$0xff]
    %v136 = vld [vmem:[#allocation5 + $0x158] sm:$0xff]
    %v137 = vld [vmem:[#allocation5 + $0x160] sm:$0xff]
    %v138 = vld [vmem:[#allocation5 + $0x168] sm:$0xff]
    %v139 = vld [vmem:[#allocation5 + $0x170] sm:$0xff]
    %v140 = vld [vmem:[#allocation5 + $0x178] sm:$0xff]
    %v141 = vld [vmem:[%s2] sm:$0x1]
    %v143 = vlaneseq
    %v144 = vshrl.u32 %v143, 7
    %v145 = vsub.s32 0, %v144
    %v146 = vrot.slane %v141, %v145
    %148 = vmatprep.subr.mxu0 0.0
    %v149 = vand.u32 %v93, 4294901760
    %150 = vmatpush1.msra.mxu0 %v149
    %151 = vmatprep.subr.mxu0 0.0
    %v152 = vand.u32 %v94, 4294901760
    %153 = vmatpush1.msra.mxu0 %v152
    %154 = vmatprep.subr.mxu0 0.0
    %v155 = vand.u32 %v95, 4294901760
    %156 = vmatpush1.msra.mxu0 %v155
    %157 = vmatprep.subr.mxu0 0.0
    %v158 = vand.u32 %v96, 4294901760
    %159 = vmatpush1.msra.mxu0 %v158
    %160 = vmatprep.subr.mxu0 0.0
    %v161 = vand.u32 %v97, 4294901760
    %162 = vmatpush1.msra.mxu0 %v161
    %163 = vmatprep.subr.mxu0 0.0
    %v164 = vand.u32 %v98, 4294901760
    %165 = vmatpush1.msra.mxu0 %v164
    %166 = vmatprep.subr.mxu0 0.0
    %v167 = vand.u32 %v99, 4294901760
    %168 = vmatpush1.msra.mxu0 %v167
    %169 = vmatprep.subr.mxu0 0.0
    %v170 = vand.u32 %v100, 4294901760
    %171 = vmatpush1.msra.mxu0 %v170
    %172 = vmatprep.subr.mxu0 0.0
    %v173 = vand.u32 %v101, 4294901760
    %174 = vmatpush1.msra.mxu0 %v173
    %175 = vmatprep.subr.mxu0 0.0
    %v176 = vand.u32 %v102, 4294901760
    %177 = vmatpush1.msra.mxu0 %v176
    %178 = vmatprep.subr.mxu0 0.0
    %v179 = vand.u32 %v103, 4294901760
    %180 = vmatpush1.msra.mxu0 %v179
    %181 = vmatprep.subr.mxu0 0.0
    %v182 = vand.u32 %v104, 4294901760
    %183 = vmatpush1.msra.mxu0 %v182
    %184 = vmatprep.subr.mxu0 0.0
    %v185 = vand.u32 %v105, 4294901760
    %186 = vmatpush1.msra.mxu0 %v185
    %187 = vmatprep.subr.mxu0 0.0
    %v188 = vand.u32 %v106, 4294901760
    %189 = vmatpush1.msra.mxu0 %v188
    %190 = vmatprep.subr.mxu0 0.0
    %v191 = vand.u32 %v107, 4294901760
    %192 = vmatpush1.msra.mxu0 %v191
    %193 = vmatprep.subr.mxu0 0.0
    %v194 = vand.u32 %v108, 4294901760
    %195 = vmatpush1.msra.mxu0 %v194
    %196 = vmatprep.subr.mxu0 0.0
    %v197 = vand.u32 %v109, 4294901760
    %198 = vmatpush1.msra.mxu0 %v197
    %199 = vmatprep.subr.mxu0 0.0
    %v200 = vand.u32 %v110, 4294901760
    %201 = vmatpush1.msra.mxu0 %v200
    %202 = vmatprep.subr.mxu0 0.0
    %v203 = vand.u32 %v111, 4294901760
    %204 = vmatpush1.msra.mxu0 %v203
    %205 = vmatprep.subr.mxu0 0.0
    %v206 = vand.u32 %v112, 4294901760
    %207 = vmatpush1.msra.mxu0 %v206
    %208 = vmatprep.subr.mxu0 0.0
    %v209 = vand.u32 %v113, 4294901760
    %210 = vmatpush1.msra.mxu0 %v209
    %211 = vmatprep.subr.mxu0 0.0
    %v212 = vand.u32 %v114, 4294901760
    %213 = vmatpush1.msra.mxu0 %v212
    %214 = vmatprep.subr.mxu0 0.0
    %v215 = vand.u32 %v115, 4294901760
    %216 = vmatpush1.msra.mxu0 %v215
    %217 = vmatprep.subr.mxu0 0.0
    %v218 = vand.u32 %v116, 4294901760
    %219 = vmatpush1.msra.mxu0 %v218
    %220 = vmatprep.subr.mxu0 0.0
    %v221 = vand.u32 %v117, 4294901760
    %222 = vmatpush1.msra.mxu0 %v221
    %223 = vmatprep.subr.mxu0 0.0
    %v224 = vand.u32 %v118, 4294901760
    %225 = vmatpush1.msra.mxu0 %v224
    %226 = vmatprep.subr.mxu0 0.0
    %v227 = vand.u32 %v119, 4294901760
    %228 = vmatpush1.msra.mxu0 %v227
    %229 = vmatprep.subr.mxu0 0.0
    %v230 = vand.u32 %v120, 4294901760
    %231 = vmatpush1.msra.mxu0 %v230
    %232 = vmatprep.subr.mxu0 0.0
    %v233 = vand.u32 %v121, 4294901760
    %234 = vmatpush1.msra.mxu0 %v233
    %235 = vmatprep.subr.mxu0 0.0
    %v236 = vand.u32 %v122, 4294901760
    %237 = vmatpush1.msra.mxu0 %v236
    %238 = vmatprep.subr.mxu0 0.0
    %v239 = vand.u32 %v123, 4294901760
    %240 = vmatpush1.msra.mxu0 %v239
    %241 = vmatprep.subr.mxu0 0.0
    %v242 = vand.u32 %v124, 4294901760
    %243 = vmatpush1.msra.mxu0 %v242
    %v244 = vand.u32 %v54, 4294901760
    %v245 = vsub.f32 %v54, %v244
    %v246 = vand.u32 %v245, 4294901760
    %v247 = vsub.f32 %v245, %v246
    %v248 = vand.u32 %v247, 4294901760
    %249 = vmatprep.mubr.f32.mxu0 %v248
    %v250 = vand.u32 %v43, 4294901760
    %v251 = vsub.f32 %v43, %v250
    %v252 = vand.u32 %v251, 4294901760
    %v253 = vsub.f32 %v251, %v252
    %v254 = vand.u32 %v253, 4294901760
    %255 = vmatmul.mubr.f32.gmra.mrb[0].mxu0 %v254
    %v256 = vpop.f32.mrb[0].mxu0
    %v257 = vadd.f32 %v146, %v256
    %v258 = vpop.f32.mrb[0].mxu0
    %v259 = vand.u32 %v56, 4294901760
    %v260 = vsub.f32 %v56, %v259
    %v261 = vand.u32 %v260, 4294901760
    %v262 = vsub.f32 %v260, %v261
    %v263 = vand.u32 %v262, 4294901760
    %264 = vmatprep.mubr.f32.mxu0 %v263
    %v265 = vand.u32 %v44, 4294901760
    %v266 = vsub.f32 %v44, %v265
    %v267 = vand.u32 %v266, 4294901760
    %v268 = vsub.f32 %v266, %v267
    %v269 = vand.u32 %v268, 4294901760
    %270 = vmatmul.mubr.f32.gmra.mrb[0].mxu0 %v269
    %v271 = vpop.f32.mrb[0].mxu0
    %v272 = vadd.f32 %v146, %v271
    %v273 = vpop.f32.mrb[0].mxu0
    %v274 = vand.u32 %v79, 4294901760
    %v275 = vsub.f32 %v79, %v274
    %v276 = vand.u32 %v275, 4294901760
    %v277 = vsub.f32 %v275, %v276
    %v278 = vand.u32 %v277, 4294901760
    %279 = vmatprep.mubr.f32.mxu0 %v278
    %v280 = vand.u32 %v74, 4294901760
    %v281 = vsub.f32 %v74, %v280
    %v282 = vand.u32 %v281, 4294901760
    %v283 = vsub.f32 %v281, %v282
    %v284 = vand.u32 %v283, 4294901760
    %285 = vmatmul.mubr.f32.gmra.mrb[0].mxu0 %v284
    %v286 = vpop.f32.mrb[0].mxu0
    %v287 = vadd.f32 %v146, %v286
    %v288 = vpop.f32.mrb[0].mxu0
    %v289 = vand.u32 %v84, 4294901760
    %v290 = vsub.f32 %v84, %v289
    %v291 = vand.u32 %v290, 4294901760
    %v292 = vsub.f32 %v290, %v291
    %v293 = vand.u32 %v292, 4294901760
    %294 = vmatprep.mubr.f32.mxu0 %v293
    %v295 = vand.u32 %v76, 4294901760
    %v296 = vsub.f32 %v76, %v295
    %v297 = vand.u32 %v296, 4294901760
    %v298 = vsub.f32 %v296, %v297
    %v299 = vand.u32 %v298, 4294901760
    %300 = vmatmul.mubr.f32.gmra.mrb[0].mxu0 %v299
    %v301 = vpop.f32.mrb[0].mxu0
    %v302 = vadd.f32 %v146, %v301
    %v303 = vpop.f32.mrb[0].mxu0
    %304 = vdwg.mxu0
    %305 = vmatprep.subr.mxu0 0.0
    %v306 = vand.u32 %v93, 4294901760
    %v307 = vsub.f32 %v93, %v306
    %v308 = vand.u32 %v307, 4294901760
    %v309 = vsub.f32 %v307, %v308
    %v310 = vand.u32 %v309, 4294901760
    %311 = vmatpush1.msra.mxu0 %v310
    %312 = vmatprep.subr.mxu0 0.0
    %v313 = vand.u32 %v94, 4294901760
    %v314 = vsub.f32 %v94, %v313
    %v315 = vand.u32 %v314, 4294901760
    %v316 = vsub.f32 %v314, %v315
    %v317 = vand.u32 %v316, 4294901760
    %318 = vmatpush1.msra.mxu0 %v317
    %319 = vmatprep.subr.mxu0 0.0
    %v320 = vand.u32 %v95, 4294901760
    %v321 = vsub.f32 %v95, %v320
    %v322 = vand.u32 %v321, 4294901760
    %v323 = vsub.f32 %v321, %v322
    %v324 = vand.u32 %v323, 4294901760
    %325 = vmatpush1.msra.mxu0 %v324
    %326 = vmatprep.subr.mxu0 0.0
    %v327 = vand.u32 %v96, 4294901760
    %v328 = vsub.f32 %v96, %v327
    %v329 = vand.u32 %v328, 4294901760
    %v330 = vsub.f32 %v328, %v329
    %v331 = vand.u32 %v330, 4294901760
    %332 = vmatpush1.msra.mxu0 %v331
    %333 = vmatprep.subr.mxu0 0.0
    %v334 = vand.u32 %v97, 4294901760
    %v335 = vsub.f32 %v97, %v334
    %v336 = vand.u32 %v335, 4294901760
    %v337 = vsub.f32 %v335, %v336
    %v338 = vand.u32 %v337, 4294901760
    %339 = vmatpush1.msra.mxu0 %v338
    %340 = vmatprep.subr.mxu0 0.0
    %v341 = vand.u32 %v98, 4294901760
    %v342 = vsub.f32 %v98, %v341
    %v343 = vand.u32 %v342, 4294901760
    %v344 = vsub.f32 %v342, %v343
    %v345 = vand.u32 %v344, 4294901760
    %346 = vmatpush1.msra.mxu0 %v345
    %347 = vmatprep.subr.mxu0 0.0
    %v348 = vand.u32 %v99, 4294901760
    %v349 = vsub.f32 %v99, %v348
    %v350 = vand.u32 %v349, 4294901760
    %v351 = vsub.f32 %v349, %v350
    %v352 = vand.u32 %v351, 4294901760
    %353 = vmatpush1.msra.mxu0 %v352
    %354 = vmatprep.subr.mxu0 0.0
    %v355 = vand.u32 %v100, 4294901760
    %v356 = vsub.f32 %v100, %v355
    %v357 = vand.u32 %v356, 4294901760
    %v358 = vsub.f32 %v356, %v357
    %v359 = vand.u32 %v358, 4294901760
    %360 = vmatpush1.msra.mxu0 %v359
    %361 = vmatprep.subr.mxu0 0.0
    %v362 = vand.u32 %v101, 4294901760
    %v363 = vsub.f32 %v101, %v362
    %v364 = vand.u32 %v363, 4294901760
    %v365 = vsub.f32 %v363, %v364
    %v366 = vand.u32 %v365, 4294901760
    %367 = vmatpush1.msra.mxu0 %v366
    %368 = vmatprep.subr.mxu0 0.0
    %v369 = vand.u32 %v102, 4294901760
    %v370 = vsub.f32 %v102, %v369
    %v371 = vand.u32 %v370, 4294901760
    %v372 = vsub.f32 %v370, %v371
    %v373 = vand.u32 %v372, 4294901760
    %374 = vmatpush1.msra.mxu0 %v373
    %375 = vmatprep.subr.mxu0 0.0
    %v376 = vand.u32 %v103, 4294901760
    %v377 = vsub.f32 %v103, %v376
    %v378 = vand.u32 %v377, 4294901760
    %v379 = vsub.f32 %v377, %v378
    %v380 = vand.u32 %v379, 4294901760
    %381 = vmatpush1.msra.mxu0 %v380
    %382 = vmatprep.subr.mxu0 0.0
    %v383 = vand.u32 %v104, 4294901760
    %v384 = vsub.f32 %v104, %v383
    %v385 = vand.u32 %v384, 4294901760
    %v386 = vsub.f32 %v384, %v385
    %v387 = vand.u32 %v386, 4294901760
    %388 = vmatpush1.msra.mxu0 %v387
    %389 = vmatprep.subr.mxu0 0.0
    %v390 = vand.u32 %v105, 4294901760
    %v391 = vsub.f32 %v105, %v390
    %v392 = vand.u32 %v391, 4294901760
    %v393 = vsub.f32 %v391, %v392
    %v394 = vand.u32 %v393, 4294901760
    %395 = vmatpush1.msra.mxu0 %v394
    %396 = vmatprep.subr.mxu0 0.0
    %v397 = vand.u32 %v106, 4294901760
    %v398 = vsub.f32 %v106, %v397
    %v399 = vand.u32 %v398, 4294901760
    %v400 = vsub.f32 %v398, %v399
    %v401 = vand.u32 %v400, 4294901760
    %402 = vmatpush1.msra.mxu0 %v401
    %403 = vmatprep.subr.mxu0 0.0
    %v404 = vand.u32 %v107, 4294901760
    %v405 = vsub.f32 %v107, %v404
    %v406 = vand.u32 %v405, 4294901760
    %v407 = vsub.f32 %v405, %v406
    %v408 = vand.u32 %v407, 4294901760
    %409 = vmatpush1.msra.mxu0 %v408
    %410 = vmatprep.subr.mxu0 0.0
    %v411 = vand.u32 %v108, 4294901760
    %v412 = vsub.f32 %v108, %v411
    %v413 = vand.u32 %v412, 4294901760
    %v414 = vsub.f32 %v412, %v413
    %v415 = vand.u32 %v414, 4294901760
    %416 = vmatpush1.msra.mxu0 %v415
    %417 = vmatprep.subr.mxu0 0.0
    %v418 = vand.u32 %v109, 4294901760
    %v419 = vsub.f32 %v109, %v418
    %v420 = vand.u32 %v419, 4294901760
    %v421 = vsub.f32 %v419, %v420
    %v422 = vand.u32 %v421, 4294901760
    %423 = vmatpush1.msra.mxu0 %v422
    %424 = vmatprep.subr.mxu0 0.0
    %v425 = vand.u32 %v110, 4294901760
    %v426 = vsub.f32 %v110, %v425
    %v427 = vand.u32 %v426, 4294901760
    %v428 = vsub.f32 %v426, %v427
    %v429 = vand.u32 %v428, 4294901760
    %430 = vmatpush1.msra.mxu0 %v429
    %431 = vmatprep.subr.mxu0 0.0
    %v432 = vand.u32 %v111, 4294901760
    %v433 = vsub.f32 %v111, %v432
    %v434 = vand.u32 %v433, 4294901760
    %v435 = vsub.f32 %v433, %v434
    %v436 = vand.u32 %v435, 4294901760
    %437 = vmatpush1.msra.mxu0 %v436
    %438 = vmatprep.subr.mxu0 0.0
    %v439 = vand.u32 %v112, 4294901760
    %v440 = vsub.f32 %v112, %v439
    %v441 = vand.u32 %v440, 4294901760
    %v442 = vsub.f32 %v440, %v441
    %v443 = vand.u32 %v442, 4294901760
    %444 = vmatpush1.msra.mxu0 %v443
    %445 = vmatprep.subr.mxu0 0.0
    %v446 = vand.u32 %v113, 4294901760
    %v447 = vsub.f32 %v113, %v446
    %v448 = vand.u32 %v447, 4294901760
    %v449 = vsub.f32 %v447, %v448
    %v450 = vand.u32 %v449, 4294901760
    %451 = vmatpush1.msra.mxu0 %v450
    %452 = vmatprep.subr.mxu0 0.0
    %v453 = vand.u32 %v114, 4294901760
    %v454 = vsub.f32 %v114, %v453
    %v455 = vand.u32 %v454, 4294901760
    %v456 = vsub.f32 %v454, %v455
    %v457 = vand.u32 %v456, 4294901760
    %458 = vmatpush1.msra.mxu0 %v457
    %459 = vmatprep.subr.mxu0 0.0
    %v460 = vand.u32 %v115, 4294901760
    %v461 = vsub.f32 %v115, %v460
    %v462 = vand.u32 %v461, 4294901760
    %v463 = vsub.f32 %v461, %v462
    %v464 = vand.u32 %v463, 4294901760
    %465 = vmatpush1.msra.mxu0 %v464
    %466 = vmatprep.subr.mxu0 0.0
    %v467 = vand.u32 %v116, 4294901760
    %v468 = vsub.f32 %v116, %v467
    %v469 = vand.u32 %v468, 4294901760
    %v470 = vsub.f32 %v468, %v469
    %v471 = vand.u32 %v470, 4294901760
    %472 = vmatpush1.msra.mxu0 %v471
    %473 = vmatprep.subr.mxu0 0.0
    %v474 = vand.u32 %v117, 4294901760
    %v475 = vsub.f32 %v117, %v474
    %v476 = vand.u32 %v475, 4294901760
    %v477 = vsub.f32 %v475, %v476
    %v478 = vand.u32 %v477, 4294901760
    %479 = vmatpush1.msra.mxu0 %v478
    %480 = vmatprep.subr.mxu0 0.0
    %v481 = vand.u32 %v118, 4294901760
    %v482 = vsub.f32 %v118, %v481
    %v483 = vand.u32 %v482, 4294901760
    %v484 = vsub.f32 %v482, %v483
    %v485 = vand.u32 %v484, 4294901760
    %486 = vmatpush1.msra.mxu0 %v485
    %487 = vmatprep.subr.mxu0 0.0
    %v488 = vand.u32 %v119, 4294901760
    %v489 = vsub.f32 %v119, %v488
    %v490 = vand.u32 %v489, 4294901760
    %v491 = vsub.f32 %v489, %v490
    %v492 = vand.u32 %v491, 4294901760
    %493 = vmatpush1.msra.mxu0 %v492
    %494 = vmatprep.subr.mxu0 0.0
    %v495 = vand.u32 %v120, 4294901760
    %v496 = vsub.f32 %v120, %v495
    %v497 = vand.u32 %v496, 4294901760
    %v498 = vsub.f32 %v496, %v497
    %v499 = vand.u32 %v498, 4294901760
    %500 = vmatpush1.msra.mxu0 %v499
    %501 = vmatprep.subr.mxu0 0.0
    %v502 = vand.u32 %v121, 4294901760
    %v503 = vsub.f32 %v121, %v502
    %v504 = vand.u32 %v503, 4294901760
    %v505 = vsub.f32 %v503, %v504
    %v506 = vand.u32 %v505, 4294901760
    %507 = vmatpush1.msra.mxu0 %v506
    %508 = vmatprep.subr.mxu0 0.0
    %v509 = vand.u32 %v122, 4294901760
    %v510 = vsub.f32 %v122, %v509
    %v511 = vand.u32 %v510, 4294901760
    %v512 = vsub.f32 %v510, %v511
    %v513 = vand.u32 %v512, 4294901760
    %514 = vmatpush1.msra.mxu0 %v513
    %515 = vmatprep.subr.mxu0 0.0
    %v516 = vand.u32 %v123, 4294901760
    %v517 = vsub.f32 %v123, %v516
    %v518 = vand.u32 %v517, 4294901760
    %v519 = vsub.f32 %v517, %v518
    %v520 = vand.u32 %v519, 4294901760
    %521 = vmatpush1.msra.mxu0 %v520
    %522 = vmatprep.subr.mxu0 0.0
    %v523 = vand.u32 %v124, 4294901760
    %v524 = vsub.f32 %v124, %v523
    %v525 = vand.u32 %v524, 4294901760
    %v526 = vsub.f32 %v524, %v525
    %v527 = vand.u32 %v526, 4294901760
    %528 = vmatpush1.msra.mxu0 %v527
    %v529 = vand.u32 %v54, 4294901760
    %530 = vmatprep.mubr.f32.mxu0 %v529
    %v531 = vand.u32 %v43, 4294901760
    %532 = vmatmul.mubr.f32.gmra.mrb[0].mxu0 %v531
    %v533 = vpop.f32.mrb[0].mxu0
    %v534 = vadd.f32 %v257, %v533
    %v535 = vpop.f32.mrb[0].mxu0
    %v536 = vand.u32 %v56, 4294901760
    %537 = vmatprep.mubr.f32.mxu0 %v536
    %v538 = vand.u32 %v44, 4294901760
    %539 = vmatmul.mubr.f32.gmra.mrb[0].mxu0 %v538
    %v540 = vpop.f32.mrb[0].mxu0
    %v541 = vadd.f32 %v272, %v540
    %v542 = vpop.f32.mrb[0].mxu0
    %v543 = vand.u32 %v79, 4294901760
    %544 = vmatprep.mubr.f32.mxu0 %v543
    %v545 = vand.u32 %v74, 4294901760
    %546 = vmatmul.mubr.f32.gmra.mrb[0].mxu0 %v545
    %v547 = vpop.f32.mrb[0].mxu0
    %v548 = vadd.f32 %v287, %v547
    %v549 = vpop.f32.mrb[0].mxu0
    %v550 = vand.u32 %v84, 4294901760
    %551 = vmatprep.mubr.f32.mxu0 %v550
    %v552 = vand.u32 %v76, 4294901760
    %553 = vmatmul.mubr.f32.gmra.mrb[0].mxu0 %v552
    %v554 = vpop.f32.mrb[0].mxu0
    %v555 = vadd.f32 %v302, %v554
    %v556 = vpop.f32.mrb[0].mxu0
    %557 = vdwg.mxu0
    %558 = vmatprep.subr.mxu0 0.0
    %v559 = vand.u32 %v93, 4294901760
    %v560 = vsub.f32 %v93, %v559
    %561 = vmatpush1.msra.mxu0 %v560
    %562 = vmatprep.subr.mxu0 0.0
    %v563 = vand.u32 %v94, 4294901760
    %v564 = vsub.f32 %v94, %v563
    %565 = vmatpush1.msra.mxu0 %v564
    %566 = vmatprep.subr.mxu0 0.0
    %v567 = vand.u32 %v95, 4294901760
    %v568 = vsub.f32 %v95, %v567
    %569 = vmatpush1.msra.mxu0 %v568
    %570 = vmatprep.subr.mxu0 0.0
    %v571 = vand.u32 %v96, 4294901760
    %v572 = vsub.f32 %v96, %v571
    %573 = vmatpush1.msra.mxu0 %v572
    %574 = vmatprep.subr.mxu0 0.0
    %v575 = vand.u32 %v97, 4294901760
    %v576 = vsub.f32 %v97, %v575
    %577 = vmatpush1.msra.mxu0 %v576
    %578 = vmatprep.subr.mxu0 0.0
    %v579 = vand.u32 %v98, 4294901760
    %v580 = vsub.f32 %v98, %v579
    %581 = vmatpush1.msra.mxu0 %v580
    %582 = vmatprep.subr.mxu0 0.0
    %v583 = vand.u32 %v99, 4294901760
    %v584 = vsub.f32 %v99, %v583
    %585 = vmatpush1.msra.mxu0 %v584
    %586 = vmatprep.subr.mxu0 0.0
    %v587 = vand.u32 %v100, 4294901760
    %v588 = vsub.f32 %v100, %v587
    %589 = vmatpush1.msra.mxu0 %v588
    %590 = vmatprep.subr.mxu0 0.0
    %v591 = vand.u32 %v101, 4294901760
    %v592 = vsub.f32 %v101, %v591
    %593 = vmatpush1.msra.mxu0 %v592
    %594 = vmatprep.subr.mxu0 0.0
    %v595 = vand.u32 %v102, 4294901760
    %v596 = vsub.f32 %v102, %v595
    %597 = vmatpush1.msra.mxu0 %v596
    %598 = vmatprep.subr.mxu0 0.0
    %v599 = vand.u32 %v103, 4294901760
    %v600 = vsub.f32 %v103, %v599
    %601 = vmatpush1.msra.mxu0 %v600
    %602 = vmatprep.subr.mxu0 0.0
    %v603 = vand.u32 %v104, 4294901760
    %v604 = vsub.f32 %v104, %v603
    %605 = vmatpush1.msra.mxu0 %v604
    %606 = vmatprep.subr.mxu0 0.0
    %v607 = vand.u32 %v105, 4294901760
    %v608 = vsub.f32 %v105, %v607
    %609 = vmatpush1.msra.mxu0 %v608
    %610 = vmatprep.subr.mxu0 0.0
    %v611 = vand.u32 %v106, 4294901760
    %v612 = vsub.f32 %v106, %v611
    %613 = vmatpush1.msra.mxu0 %v612
    %614 = vmatprep.subr.mxu0 0.0
    %v615 = vand.u32 %v107, 4294901760
    %v616 = vsub.f32 %v107, %v615
    %617 = vmatpush1.msra.mxu0 %v616
    %618 = vmatprep.subr.mxu0 0.0
    %v619 = vand.u32 %v108, 4294901760
    %v620 = vsub.f32 %v108, %v619
    %621 = vmatpush1.msra.mxu0 %v620
    %622 = vmatprep.subr.mxu0 0.0
    %v623 = vand.u32 %v109, 4294901760
    %v624 = vsub.f32 %v109, %v623
    %625 = vmatpush1.msra.mxu0 %v624
    %626 = vmatprep.subr.mxu0 0.0
    %v627 = vand.u32 %v110, 4294901760
    %v628 = vsub.f32 %v110, %v627
    %629 = vmatpush1.msra.mxu0 %v628
    %630 = vmatprep.subr.mxu0 0.0
    %v631 = vand.u32 %v111, 4294901760
    %v632 = vsub.f32 %v111, %v631
    %633 = vmatpush1.msra.mxu0 %v632
    %634 = vmatprep.subr.mxu0 0.0
    %v635 = vand.u32 %v112, 4294901760
    %v636 = vsub.f32 %v112, %v635
    %637 = vmatpush1.msra.mxu0 %v636
    %638 = vmatprep.subr.mxu0 0.0
    %v639 = vand.u32 %v113, 4294901760
    %v640 = vsub.f32 %v113, %v639
    %641 = vmatpush1.msra.mxu0 %v640
    %642 = vmatprep.subr.mxu0 0.0
    %v643 = vand.u32 %v114, 4294901760
    %v644 = vsub.f32 %v114, %v643
    %645 = vmatpush1.msra.mxu0 %v644
    %646 = vmatprep.subr.mxu0 0.0
    %v647 = vand.u32 %v115, 4294901760
    %v648 = vsub.f32 %v115, %v647
    %649 = vmatpush1.msra.mxu0 %v648
    %650 = vmatprep.subr.mxu0 0.0
    %v651 = vand.u32 %v116, 4294901760
    %v652 = vsub.f32 %v116, %v651
    %653 = vmatpush1.msra.mxu0 %v652
    %654 = vmatprep.subr.mxu0 0.0
    %v655 = vand.u32 %v117, 4294901760
    %v656 = vsub.f32 %v117, %v655
    %657 = vmatpush1.msra.mxu0 %v656
    %658 = vmatprep.subr.mxu0 0.0
    %v659 = vand.u32 %v118, 4294901760
    %v660 = vsub.f32 %v118, %v659
    %661 = vmatpush1.msra.mxu0 %v660
    %662 = vmatprep.subr.mxu0 0.0
    %v663 = vand.u32 %v119, 4294901760
    %v664 = vsub.f32 %v119, %v663
    %665 = vmatpush1.msra.mxu0 %v664
    %666 = vmatprep.subr.mxu0 0.0
    %v667 = vand.u32 %v120, 4294901760
    %v668 = vsub.f32 %v120, %v667
    %669 = vmatpush1.msra.mxu0 %v668
    %670 = vmatprep.subr.mxu0 0.0
    %v671 = vand.u32 %v121, 4294901760
    %v672 = vsub.f32 %v121, %v671
    %673 = vmatpush1.msra.mxu0 %v672
    %674 = vmatprep.subr.mxu0 0.0
    %v675 = vand.u32 %v122, 4294901760
    %v676 = vsub.f32 %v122, %v675
    %677 = vmatpush1.msra.mxu0 %v676
    %678 = vmatprep.subr.mxu0 0.0
    %v679 = vand.u32 %v123, 4294901760
    %v680 = vsub.f32 %v123, %v679
    %681 = vmatpush1.msra.mxu0 %v680
    %682 = vmatprep.subr.mxu0 0.0
    %v683 = vand.u32 %v124, 4294901760
    %v684 = vsub.f32 %v124, %v683
    %685 = vmatpush1.msra.mxu0 %v684
    %v686 = vand.u32 %v54, 4294901760
    %v687 = vsub.f32 %v54, %v686
    %688 = vmatprep.mubr.f32.mxu0 %v687
    %v689 = vand.u32 %v43, 4294901760
    %v690 = vsub.f32 %v43, %v689
    %691 = vmatmul.mubr.f32.gmra.mrb[0].mxu0 %v690
    %v692 = vpop.f32.mrb[0].mxu0
    %v693 = vadd.f32 %v534, %v692
    %v694 = vpop.f32.mrb[0].mxu0
    %v695 = vand.u32 %v56, 4294901760
    %v696 = vsub.f32 %v56, %v695
    %697 = vmatprep.mubr.f32.mxu0 %v696
    %v698 = vand.u32 %v44, 4294901760
    %v699 = vsub.f32 %v44, %v698
    %700 = vmatmul.mubr.f32.gmra.mrb[0].mxu0 %v699
    %v701 = vpop.f32.mrb[0].mxu0
    %v702 = vadd.f32 %v541, %v701
    %v703 = vpop.f32.mrb[0].mxu0
    %v704 = vand.u32 %v79, 4294901760
    %v705 = vsub.f32 %v79, %v704
    %706 = vmatprep.mubr.f32.mxu0 %v705
    %v707 = vand.u32 %v74, 4294901760
    %v708 = vsub.f32 %v74, %v707
    %709 = vmatmul.mubr.f32.gmra.mrb[0].mxu0 %v708
    %v710 = vpop.f32.mrb[0].mxu0
    %v711 = vadd.f32 %v548, %v710
    %v712 = vpop.f32.mrb[0].mxu0
    %v713 = vand.u32 %v84, 4294901760
    %v714 = vsub.f32 %v84, %v713
    %715 = vmatprep.mubr.f32.mxu0 %v714
    %v716 = vand.u32 %v76, 4294901760
    %v717 = vsub.f32 %v76, %v716
    %718 = vmatmul.mubr.f32.gmra.mrb[0].mxu0 %v717
    %v719 = vpop.f32.mrb[0].mxu0
    %v720 = vadd.f32 %v555, %v719
    %v721 = vpop.f32.mrb[0].mxu0
    %722 = vdwg.mxu0
    %723 = vmatprep.subr.mxu0 0.0
    %v724 = vand.u32 %v93, 4294901760
    %725 = vmatpush1.msra.mxu0 %v724
    %726 = vmatprep.subr.mxu0 0.0
    %v727 = vand.u32 %v94, 4294901760
    %728 = vmatpush1.msra.mxu0 %v727
    %729 = vmatprep.subr.mxu0 0.0
    %v730 = vand.u32 %v95, 4294901760
    %731 = vmatpush1.msra.mxu0 %v730
    %732 = vmatprep.subr.mxu0 0.0
    %v733 = vand.u32 %v96, 4294901760
    %734 = vmatpush1.msra.mxu0 %v733
    %735 = vmatprep.subr.mxu0 0.0
    %v736 = vand.u32 %v97, 4294901760
    %737 = vmatpush1.msra.mxu0 %v736
    %738 = vmatprep.subr.mxu0 0.0
    %v739 = vand.u32 %v98, 4294901760
    %740 = vmatpush1.msra.mxu0 %v739
    %741 = vmatprep.subr.mxu0 0.0
    %v742 = vand.u32 %v99, 4294901760
    %743 = vmatpush1.msra.mxu0 %v742
    %744 = vmatprep.subr.mxu0 0.0
    %v745 = vand.u32 %v100, 4294901760
    %746 = vmatpush1.msra.mxu0 %v745
    %747 = vmatprep.subr.mxu0 0.0
    %v748 = vand.u32 %v101, 4294901760
    %749 = vmatpush1.msra.mxu0 %v748
    %750 = vmatprep.subr.mxu0 0.0
    %v751 = vand.u32 %v102, 4294901760
    %752 = vmatpush1.msra.mxu0 %v751
    %753 = vmatprep.subr.mxu0 0.0
    %v754 = vand.u32 %v103, 4294901760
    %755 = vmatpush1.msra.mxu0 %v754
    %756 = vmatprep.subr.mxu0 0.0
    %v757 = vand.u32 %v104, 4294901760
    %758 = vmatpush1.msra.mxu0 %v757
    %759 = vmatprep.subr.mxu0 0.0
    %v760 = vand.u32 %v105, 4294901760
    %761 = vmatpush1.msra.mxu0 %v760
    %762 = vmatprep.subr.mxu0 0.0
    %v763 = vand.u32 %v106, 4294901760
    %764 = vmatpush1.msra.mxu0 %v763
    %765 = vmatprep.subr.mxu0 0.0
    %v766 = vand.u32 %v107, 4294901760
    %767 = vmatpush1.msra.mxu0 %v766
    %768 = vmatprep.subr.mxu0 0.0
    %v769 = vand.u32 %v108, 4294901760
    %770 = vmatpush1.msra.mxu0 %v769
    %771 = vmatprep.subr.mxu0 0.0
    %v772 = vand.u32 %v109, 4294901760
    %773 = vmatpush1.msra.mxu0 %v772
    %774 = vmatprep.subr.mxu0 0.0
    %v775 = vand.u32 %v110, 4294901760
    %776 = vmatpush1.msra.mxu0 %v775
    %777 = vmatprep.subr.mxu0 0.0
    %v778 = vand.u32 %v111, 4294901760
    %779 = vmatpush1.msra.mxu0 %v778
    %780 = vmatprep.subr.mxu0 0.0
    %v781 = vand.u32 %v112, 4294901760
    %782 = vmatpush1.msra.mxu0 %v781
    %783 = vmatprep.subr.mxu0 0.0
    %v784 = vand.u32 %v113, 4294901760
    %785 = vmatpush1.msra.mxu0 %v784
    %786 = vmatprep.subr.mxu0 0.0
    %v787 = vand.u32 %v114, 4294901760
    %788 = vmatpush1.msra.mxu0 %v787
    %789 = vmatprep.subr.mxu0 0.0
    %v790 = vand.u32 %v115, 4294901760
    %791 = vmatpush1.msra.mxu0 %v790
    %792 = vmatprep.subr.mxu0 0.0
    %v793 = vand.u32 %v116, 4294901760
    %794 = vmatpush1.msra.mxu0 %v793
    %795 = vmatprep.subr.mxu0 0.0
    %v796 = vand.u32 %v117, 4294901760
    %797 = vmatpush1.msra.mxu0 %v796
    %798 = vmatprep.subr.mxu0 0.0
    %v799 = vand.u32 %v118, 4294901760
    %800 = vmatpush1.msra.mxu0 %v799
    %801 = vmatprep.subr.mxu0 0.0
    %v802 = vand.u32 %v119, 4294901760
    %803 = vmatpush1.msra.mxu0 %v802
    %804 = vmatprep.subr.mxu0 0.0
    %v805 = vand.u32 %v120, 4294901760
    %806 = vmatpush1.msra.mxu0 %v805
    %807 = vmatprep.subr.mxu0 0.0
    %v808 = vand.u32 %v121, 4294901760
    %809 = vmatpush1.msra.mxu0 %v808
    %810 = vmatprep.subr.mxu0 0.0
    %v811 = vand.u32 %v122, 4294901760
    %812 = vmatpush1.msra.mxu0 %v811
    %813 = vmatprep.subr.mxu0 0.0
    %v814 = vand.u32 %v123, 4294901760
    %815 = vmatpush1.msra.mxu0 %v814
    %816 = vmatprep.subr.mxu0 0.0
    %v817 = vand.u32 %v124, 4294901760
    %818 = vmatpush1.msra.mxu0 %v817
    %v819 = vand.u32 %v54, 4294901760
    %v820 = vsub.f32 %v54, %v819
    %v821 = vand.u32 %v820, 4294901760
    %822 = vmatprep.mubr.f32.mxu0 %v821
    %v823 = vand.u32 %v43, 4294901760
    %v824 = vsub.f32 %v43, %v823
    %v825 = vand.u32 %v824, 4294901760
    %826 = vmatmul.mubr.f32.gmra.mrb[0].mxu0 %v825
    %v827 = vpop.f32.mrb[0].mxu0
    %v828 = vadd.f32 %v693, %v827
    %v829 = vpop.f32.mrb[0].mxu0
    %v830 = vand.u32 %v56, 4294901760
    %v831 = vsub.f32 %v56, %v830
    %v832 = vand.u32 %v831, 4294901760
    %833 = vmatprep.mubr.f32.mxu0 %v832
    %v834 = vand.u32 %v44, 4294901760
    %v835 = vsub.f32 %v44, %v834
    %v836 = vand.u32 %v835, 4294901760
    %837 = vmatmul.mubr.f32.gmra.mrb[0].mxu0 %v836
    %v838 = vpop.f32.mrb[0].mxu0
    %v839 = vadd.f32 %v702, %v838
    %v840 = vpop.f32.mrb[0].mxu0
    %v841 = vand.u32 %v79, 4294901760
    %v842 = vsub.f32 %v79, %v841
    %v843 = vand.u32 %v842, 4294901760
    %844 = vmatprep.mubr.f32.mxu0 %v843
    %v845 = vand.u32 %v74, 4294901760
    %v846 = vsub.f32 %v74, %v845
    %v847 = vand.u32 %v846, 4294901760
    %848 = vmatmul.mubr.f32.gmra.mrb[0].mxu0 %v847
    %v849 = vpop.f32.mrb[0].mxu0
    %v850 = vadd.f32 %v711, %v849
    %v851 = vpop.f32.mrb[0].mxu0
    %v852 = vand.u32 %v84, 4294901760
    %v853 = vsub.f32 %v84, %v852
    %v854 = vand.u32 %v853, 4294901760
    %855 = vmatprep.mubr.f32.mxu0 %v854
    %v856 = vand.u32 %v76, 4294901760
    %v857 = vsub.f32 %v76, %v856
    %v858 = vand.u32 %v857, 4294901760
    %859 = vmatmul.mubr.f32.gmra.mrb[0].mxu0 %v858
    %v860 = vpop.f32.mrb[0].mxu0
    %v861 = vadd.f32 %v720, %v860
    %v862 = vpop.f32.mrb[0].mxu0
    %863 = vdwg.mxu0
    %864 = vmatprep.subr.mxu0 0.0
    %v865 = vand.u32 %v93, 4294901760
    %v866 = vsub.f32 %v93, %v865
    %v867 = vand.u32 %v866, 4294901760
    %868 = vmatpush1.msra.mxu0 %v867
    %869 = vmatprep.subr.mxu0 0.0
    %v870 = vand.u32 %v94, 4294901760
    %v871 = vsub.f32 %v94, %v870
    %v872 = vand.u32 %v871, 4294901760
    %873 = vmatpush1.msra.mxu0 %v872
    %874 = vmatprep.subr.mxu0 0.0
    %v875 = vand.u32 %v95, 4294901760
    %v876 = vsub.f32 %v95, %v875
    %v877 = vand.u32 %v876, 4294901760
    %878 = vmatpush1.msra.mxu0 %v877
    %879 = vmatprep.subr.mxu0 0.0
    %v880 = vand.u32 %v96, 4294901760
    %v881 = vsub.f32 %v96, %v880
    %v882 = vand.u32 %v881, 4294901760
    %883 = vmatpush1.msra.mxu0 %v882
    %884 = vmatprep.subr.mxu0 0.0
    %v885 = vand.u32 %v97, 4294901760
    %v886 = vsub.f32 %v97, %v885
    %v887 = vand.u32 %v886, 4294901760
    %888 = vmatpush1.msra.mxu0 %v887
    %889 = vmatprep.subr.mxu0 0.0
    %v890 = vand.u32 %v98, 4294901760
    %v891 = vsub.f32 %v98, %v890
    %v892 = vand.u32 %v891, 4294901760
    %893 = vmatpush1.msra.mxu0 %v892
    %894 = vmatprep.subr.mxu0 0.0
    %v895 = vand.u32 %v99, 4294901760
    %v896 = vsub.f32 %v99, %v895
    %v897 = vand.u32 %v896, 4294901760
    %898 = vmatpush1.msra.mxu0 %v897
    %899 = vmatprep.subr.mxu0 0.0
    %v900 = vand.u32 %v100, 4294901760
    %v901 = vsub.f32 %v100, %v900
    %v902 = vand.u32 %v901, 4294901760
    %903 = vmatpush1.msra.mxu0 %v902
    %904 = vmatprep.subr.mxu0 0.0
    %v905 = vand.u32 %v101, 4294901760
    %v906 = vsub.f32 %v101, %v905
    %v907 = vand.u32 %v906, 4294901760
    %908 = vmatpush1.msra.mxu0 %v907
    %909 = vmatprep.subr.mxu0 0.0
    %v910 = vand.u32 %v102, 4294901760
    %v911 = vsub.f32 %v102, %v910
    %v912 = vand.u32 %v911, 4294901760
    %913 = vmatpush1.msra.mxu0 %v912
    %914 = vmatprep.subr.mxu0 0.0
    %v915 = vand.u32 %v103, 4294901760
    %v916 = vsub.f32 %v103, %v915
    %v917 = vand.u32 %v916, 4294901760
    %918 = vmatpush1.msra.mxu0 %v917
    %919 = vmatprep.subr.mxu0 0.0
    %v920 = vand.u32 %v104, 4294901760
    %v921 = vsub.f32 %v104, %v920
    %v922 = vand.u32 %v921, 4294901760
    %923 = vmatpush1.msra.mxu0 %v922
    %924 = vmatprep.subr.mxu0 0.0
    %v925 = vand.u32 %v105, 4294901760
    %v926 = vsub.f32 %v105, %v925
    %v927 = vand.u32 %v926, 4294901760
    %928 = vmatpush1.msra.mxu0 %v927
    %929 = vmatprep.subr.mxu0 0.0
    %v930 = vand.u32 %v106, 4294901760
    %v931 = vsub.f32 %v106, %v930
    %v932 = vand.u32 %v931, 4294901760
    %933 = vmatpush1.msra.mxu0 %v932
    %934 = vmatprep.subr.mxu0 0.0
    %v935 = vand.u32 %v107, 4294901760
    %v936 = vsub.f32 %v107, %v935
    %v937 = vand.u32 %v936, 4294901760
    %938 = vmatpush1.msra.mxu0 %v937
    %939 = vmatprep.subr.mxu0 0.0
    %v940 = vand.u32 %v108, 4294901760
    %v941 = vsub.f32 %v108, %v940
    %v942 = vand.u32 %v941, 4294901760
    %943 = vmatpush1.msra.mxu0 %v942
    %944 = vmatprep.subr.mxu0 0.0
    %v945 = vand.u32 %v109, 4294901760
    %v946 = vsub.f32 %v109, %v945
    %v947 = vand.u32 %v946, 4294901760
    %948 = vmatpush1.msra.mxu0 %v947
    %949 = vmatprep.subr.mxu0 0.0
    %v950 = vand.u32 %v110, 4294901760
    %v951 = vsub.f32 %v110, %v950
    %v952 = vand.u32 %v951, 4294901760
    %953 = vmatpush1.msra.mxu0 %v952
    %954 = vmatprep.subr.mxu0 0.0
    %v955 = vand.u32 %v111, 4294901760
    %v956 = vsub.f32 %v111, %v955
    %v957 = vand.u32 %v956, 4294901760
    %958 = vmatpush1.msra.mxu0 %v957
    %959 = vmatprep.subr.mxu0 0.0
    %v960 = vand.u32 %v112, 4294901760
    %v961 = vsub.f32 %v112, %v960
    %v962 = vand.u32 %v961, 4294901760
    %963 = vmatpush1.msra.mxu0 %v962
    %964 = vmatprep.subr.mxu0 0.0
    %v965 = vand.u32 %v113, 4294901760
    %v966 = vsub.f32 %v113, %v965
    %v967 = vand.u32 %v966, 4294901760
    %968 = vmatpush1.msra.mxu0 %v967
    %969 = vmatprep.subr.mxu0 0.0
    %v970 = vand.u32 %v114, 4294901760
    %v971 = vsub.f32 %v114, %v970
    %v972 = vand.u32 %v971, 4294901760
    %973 = vmatpush1.msra.mxu0 %v972
    %974 = vmatprep.subr.mxu0 0.0
    %v975 = vand.u32 %v115, 4294901760
    %v976 = vsub.f32 %v115, %v975
    %v977 = vand.u32 %v976, 4294901760
    %978 = vmatpush1.msra.mxu0 %v977
    %979 = vmatprep.subr.mxu0 0.0
    %v980 = vand.u32 %v116, 4294901760
    %v981 = vsub.f32 %v116, %v980
    %v982 = vand.u32 %v981, 4294901760
    %983 = vmatpush1.msra.mxu0 %v982
    %984 = vmatprep.subr.mxu0 0.0
    %v985 = vand.u32 %v117, 4294901760
    %v986 = vsub.f32 %v117, %v985
    %v987 = vand.u32 %v986, 4294901760
    %988 = vmatpush1.msra.mxu0 %v987
    %989 = vmatprep.subr.mxu0 0.0
    %v990 = vand.u32 %v118, 4294901760
    %v991 = vsub.f32 %v118, %v990
    %v992 = vand.u32 %v991, 4294901760
    %993 = vmatpush1.msra.mxu0 %v992
    %994 = vmatprep.subr.mxu0 0.0
    %v995 = vand.u32 %v119, 4294901760
    %v996 = vsub.f32 %v119, %v995
    %v997 = vand.u32 %v996, 4294901760
    %998 = vmatpush1.msra.mxu0 %v997
    %999 = vmatprep.subr.mxu0 0.0
    %v1000 = vand.u32 %v120, 4294901760
    %v1001 = vsub.f32 %v120, %v1000
    %v1002 = vand.u32 %v1001, 4294901760
    %1003 = vmatpush1.msra.mxu0 %v1002
    %1004 = vmatprep.subr.mxu0 0.0
    %v1005 = vand.u32 %v121, 4294901760
    %v1006 = vsub.f32 %v121, %v1005
    %v1007 = vand.u32 %v1006, 4294901760
    %1008 = vmatpush1.msra.mxu0 %v1007
    %1009 = vmatprep.subr.mxu0 0.0
    %v1010 = vand.u32 %v122, 4294901760
    %v1011 = vsub.f32 %v122, %v1010
    %v1012 = vand.u32 %v1011, 4294901760
    %1013 = vmatpush1.msra.mxu0 %v1012
    %1014 = vmatprep.subr.mxu0 0.0
    %v1015 = vand.u32 %v123, 4294901760
    %v1016 = vsub.f32 %v123, %v1015
    %v1017 = vand.u32 %v1016, 4294901760
    %1018 = vmatpush1.msra.mxu0 %v1017
    %1019 = vmatprep.subr.mxu0 0.0
    %v1020 = vand.u32 %v124, 4294901760
    %v1021 = vsub.f32 %v124, %v1020
    %v1022 = vand.u32 %v1021, 4294901760
    %1023 = vmatpush1.msra.mxu0 %v1022
    %v1024 = vand.u32 %v54, 4294901760
    %1025 = vmatprep.mubr.f32.mxu0 %v1024
    %v1026 = vand.u32 %v43, 4294901760
    %1027 = vmatmul.mubr.f32.gmra.mrb[0].mxu0 %v1026
    %v1028 = vpop.f32.mrb[0].mxu0
    %v1029 = vadd.f32 %v828, %v1028
    %v1030 = vpop.f32.mrb[0].mxu0
    %v1031 = vand.u32 %v56, 4294901760
    %1032 = vmatprep.mubr.f32.mxu0 %v1031
    %v1033 = vand.u32 %v44, 4294901760
    %1034 = vmatmul.mubr.f32.gmra.mrb[0].mxu0 %v1033
    %v1035 = vpop.f32.mrb[0].mxu0
    %v1036 = vadd.f32 %v839, %v1035
    %v1037 = vpop.f32.mrb[0].mxu0
    %v1038 = vand.u32 %v79, 4294901760
    %1039 = vmatprep.mubr.f32.mxu0 %v1038
    %v1040 = vand.u32 %v74, 4294901760
    %1041 = vmatmul.mubr.f32.gmra.mrb[0].mxu0 %v1040
    %v1042 = vpop.f32.mrb[0].mxu0
    %v1043 = vadd.f32 %v850, %v1042
    %v1044 = vpop.f32.mrb[0].mxu0
    %v1045 = vand.u32 %v84, 4294901760
    %1046 = vmatprep.mubr.f32.mxu0 %v1045
    %v1047 = vand.u32 %v76, 4294901760
    %1048 = vmatmul.mubr.f32.gmra.mrb[0].mxu0 %v1047
    %v1049 = vpop.f32.mrb[0].mxu0
    %v1050 = vadd.f32 %v861, %v1049
    %v1051 = vpop.f32.mrb[0].mxu0
    %1052 = vdwg.mxu0
    %1053 = vmatprep.subr.mxu0 0.0
    %v1054 = vand.u32 %v93, 4294901760
    %1055 = vmatpush1.msra.mxu0 %v1054
    %1056 = vmatprep.subr.mxu0 0.0
    %v1057 = vand.u32 %v94, 4294901760
    %1058 = vmatpush1.msra.mxu0 %v1057
    %1059 = vmatprep.subr.mxu0 0.0
    %v1060 = vand.u32 %v95, 4294901760
    %1061 = vmatpush1.msra.mxu0 %v1060
    %1062 = vmatprep.subr.mxu0 0.0
    %v1063 = vand.u32 %v96, 4294901760
    %1064 = vmatpush1.msra.mxu0 %v1063
    %1065 = vmatprep.subr.mxu0 0.0
    %v1066 = vand.u32 %v97, 4294901760
    %1067 = vmatpush1.msra.mxu0 %v1066
    %1068 = vmatprep.subr.mxu0 0.0
    %v1069 = vand.u32 %v98, 4294901760
    %1070 = vmatpush1.msra.mxu0 %v1069
    %1071 = vmatprep.subr.mxu0 0.0
    %v1072 = vand.u32 %v99, 4294901760
    %1073 = vmatpush1.msra.mxu0 %v1072
    %1074 = vmatprep.subr.mxu0 0.0
    %v1075 = vand.u32 %v100, 4294901760
    %1076 = vmatpush1.msra.mxu0 %v1075
    %1077 = vmatprep.subr.mxu0 0.0
    %v1078 = vand.u32 %v101, 4294901760
    %1079 = vmatpush1.msra.mxu0 %v1078
    %1080 = vmatprep.subr.mxu0 0.0
    %v1081 = vand.u32 %v102, 4294901760
    %1082 = vmatpush1.msra.mxu0 %v1081
    %1083 = vmatprep.subr.mxu0 0.0
    %v1084 = vand.u32 %v103, 4294901760
    %1085 = vmatpush1.msra.mxu0 %v1084
    %1086 = vmatprep.subr.mxu0 0.0
    %v1087 = vand.u32 %v104, 4294901760
    %1088 = vmatpush1.msra.mxu0 %v1087
    %1089 = vmatprep.subr.mxu0 0.0
    %v1090 = vand.u32 %v105, 4294901760
    %1091 = vmatpush1.msra.mxu0 %v1090
    %1092 = vmatprep.subr.mxu0 0.0
    %v1093 = vand.u32 %v106, 4294901760
    %1094 = vmatpush1.msra.mxu0 %v1093
    %1095 = vmatprep.subr.mxu0 0.0
    %v1096 = vand.u32 %v107, 4294901760
    %1097 = vmatpush1.msra.mxu0 %v1096
    %1098 = vmatprep.subr.mxu0 0.0
    %v1099 = vand.u32 %v108, 4294901760
    %1100 = vmatpush1.msra.mxu0 %v1099
    %1101 = vmatprep.subr.mxu0 0.0
    %v1102 = vand.u32 %v109, 4294901760
    %1103 = vmatpush1.msra.mxu0 %v1102
    %1104 = vmatprep.subr.mxu0 0.0
    %v1105 = vand.u32 %v110, 4294901760
    %1106 = vmatpush1.msra.mxu0 %v1105
    %1107 = vmatprep.subr.mxu0 0.0
    %v1108 = vand.u32 %v111, 4294901760
    %1109 = vmatpush1.msra.mxu0 %v1108
    %1110 = vmatprep.subr.mxu0 0.0
    %v1111 = vand.u32 %v112, 4294901760
    %1112 = vmatpush1.msra.mxu0 %v1111
    %1113 = vmatprep.subr.mxu0 0.0
    %v1114 = vand.u32 %v113, 4294901760
    %1115 = vmatpush1.msra.mxu0 %v1114
    %1116 = vmatprep.subr.mxu0 0.0
    %v1117 = vand.u32 %v114, 4294901760
    %1118 = vmatpush1.msra.mxu0 %v1117
    %1119 = vmatprep.subr.mxu0 0.0
    %v1120 = vand.u32 %v115, 4294901760
    %1121 = vmatpush1.msra.mxu0 %v1120
    %1122 = vmatprep.subr.mxu0 0.0
    %v1123 = vand.u32 %v116, 4294901760
    %1124 = vmatpush1.msra.mxu0 %v1123
    %1125 = vmatprep.subr.mxu0 0.0
    %v1126 = vand.u32 %v117, 4294901760
    %1127 = vmatpush1.msra.mxu0 %v1126
    %1128 = vmatprep.subr.mxu0 0.0
    %v1129 = vand.u32 %v118, 4294901760
    %1130 = vmatpush1.msra.mxu0 %v1129
    %1131 = vmatprep.subr.mxu0 0.0
    %v1132 = vand.u32 %v119, 4294901760
    %1133 = vmatpush1.msra.mxu0 %v1132
    %1134 = vmatprep.subr.mxu0 0.0
    %v1135 = vand.u32 %v120, 4294901760
    %1136 = vmatpush1.msra.mxu0 %v1135
    %1137 = vmatprep.subr.mxu0 0.0
    %v1138 = vand.u32 %v121, 4294901760
    %1139 = vmatpush1.msra.mxu0 %v1138
    %1140 = vmatprep.subr.mxu0 0.0
    %v1141 = vand.u32 %v122, 4294901760
    %1142 = vmatpush1.msra.mxu0 %v1141
    %1143 = vmatprep.subr.mxu0 0.0
    %v1144 = vand.u32 %v123, 4294901760
    %1145 = vmatpush1.msra.mxu0 %v1144
    %1146 = vmatprep.subr.mxu0 0.0
    %v1147 = vand.u32 %v124, 4294901760
    %1148 = vmatpush1.msra.mxu0 %v1147
    %v1149 = vand.u32 %v54, 4294901760
    %1150 = vmatprep.mubr.f32.mxu0 %v1149
    %v1151 = vand.u32 %v43, 4294901760
    %1152 = vmatmul.mubr.f32.gmra.mrb[0].mxu0 %v1151
    %v1153 = vpop.f32.mrb[0].mxu0
    %v1154 = vadd.f32 %v1029, %v1153
    %v1155 = vpop.f32.mrb[0].mxu0
    %v1156 = vand.u32 %v56, 4294901760
    %1157 = vmatprep.mubr.f32.mxu0 %v1156
    %v1158 = vand.u32 %v44, 4294901760
    %1159 = vmatmul.mubr.f32.gmra.mrb[0].mxu0 %v1158
    %v1160 = vpop.f32.mrb[0].mxu0
    %v1161 = vadd.f32 %v1036, %v1160
    %v1162 = vpop.f32.mrb[0].mxu0
    %v1163 = vand.u32 %v79, 4294901760
    %1164 = vmatprep.mubr.f32.mxu0 %v1163
    %v1165 = vand.u32 %v74, 4294901760
    %1166 = vmatmul.mubr.f32.gmra.mrb[0].mxu0 %v1165
    %v1167 = vpop.f32.mrb[0].mxu0
    %v1168 = vadd.f32 %v1043, %v1167
    %v1169 = vpop.f32.mrb[0].mxu0
    %v1170 = vand.u32 %v84, 4294901760
    %1171 = vmatprep.mubr.f32.mxu0 %v1170
    %v1172 = vand.u32 %v76, 4294901760
    %1173 = vmatmul.mubr.f32.gmra.mrb[0].mxu0 %v1172
    %v1174 = vpop.f32.mrb[0].mxu0
    %v1175 = vadd.f32 %v1050, %v1174
    %v1176 = vpop.f32.mrb[0].mxu0
    %1177 = vdwg.mxu0
    %1178 = vmatprep.subr.mxu0 0.0
    %v1179 = vand.u32 %v125, 4294901760
    %1180 = vmatpush1.msra.mxu0 %v1179
    %1181 = vmatprep.subr.mxu0 0.0
    %v1182 = vand.u32 %v126, 4294901760
    %1183 = vmatpush1.msra.mxu0 %v1182
    %1184 = vmatprep.subr.mxu0 0.0
    %v1185 = vand.u32 %v127, 4294901760
    %1186 = vmatpush1.msra.mxu0 %v1185
    %1187 = vmatprep.subr.mxu0 0.0
    %v1188 = vand.u32 %v128, 4294901760
    %1189 = vmatpush1.msra.mxu0 %v1188
    %1190 = vmatprep.subr.mxu0 0.0
    %v1191 = vand.u32 %v129, 4294901760
    %1192 = vmatpush1.msra.mxu0 %v1191
    %1193 = vmatprep.subr.mxu0 0.0
    %v1194 = vand.u32 %v130, 4294901760
    %1195 = vmatpush1.msra.mxu0 %v1194
    %1196 = vmatprep.subr.mxu0 0.0
    %v1197 = vand.u32 %v131, 4294901760
    %1198 = vmatpush1.msra.mxu0 %v1197
    %1199 = vmatprep.subr.mxu0 0.0
    %v1200 = vand.u32 %v132, 4294901760
    %1201 = vmatpush1.msra.mxu0 %v1200
    %1202 = vmatprep.subr.mxu0 0.0
    %v1203 = vand.u32 %v133, 4294901760
    %1204 = vmatpush1.msra.mxu0 %v1203
    %1205 = vmatprep.subr.mxu0 0.0
    %v1206 = vand.u32 %v134, 4294901760
    %1207 = vmatpush1.msra.mxu0 %v1206
    %1208 = vmatprep.subr.mxu0 0.0
    %v1209 = vand.u32 %v135, 4294901760
    %1210 = vmatpush1.msra.mxu0 %v1209
    %1211 = vmatprep.subr.mxu0 0.0
    %v1212 = vand.u32 %v136, 4294901760
    %1213 = vmatpush1.msra.mxu0 %v1212
    %1214 = vmatprep.subr.mxu0 0.0
    %v1215 = vand.u32 %v137, 4294901760
    %1216 = vmatpush1.msra.mxu0 %v1215
    %1217 = vmatprep.subr.mxu0 0.0
    %v1218 = vand.u32 %v138, 4294901760
    %1219 = vmatpush1.msra.mxu0 %v1218
    %1220 = vmatprep.subr.mxu0 0.0
    %v1221 = vand.u32 %v139, 4294901760
    %1222 = vmatpush1.msra.mxu0 %v1221
    %1223 = vmatprep.subr.mxu0 0.0
    %v1224 = vand.u32 %v140, 4294901760
    %1225 = vmatpush1.msra.mxu0 %v1224
    %1226 = vmatprep.subr.mxu0 0.0
    %1227 = vmatpush1.msra.mxu0 0.0
    %1228 = vmatprep.subr.mxu0 0.0
    %1229 = vmatpush1.msra.mxu0 0.0
    %1230 = vmatprep.subr.mxu0 0.0
    %1231 = vmatpush1.msra.mxu0 0.0
    %1232 = vmatprep.subr.mxu0 0.0
    %1233 = vmatpush1.msra.mxu0 0.0
    %1234 = vmatprep.subr.mxu0 0.0
    %1235 = vmatpush1.msra.mxu0 0.0
    %1236 = vmatprep.subr.mxu0 0.0
    %1237 = vmatpush1.msra.mxu0 0.0
    %1238 = vmatprep.subr.mxu0 0.0
    %1239 = vmatpush1.msra.mxu0 0.0
    %1240 = vmatprep.subr.mxu0 0.0
    %1241 = vmatpush1.msra.mxu0 0.0
    %1242 = vmatprep.subr.mxu0 0.0
    %1243 = vmatpush1.msra.mxu0 0.0
    %1244 = vmatprep.subr.mxu0 0.0
    %1245 = vmatpush1.msra.mxu0 0.0
    %1246 = vmatprep.subr.mxu0 0.0
    %1247 = vmatpush1.msra.mxu0 0.0
    %1248 = vmatprep.subr.mxu0 0.0
    %1249 = vmatpush1.msra.mxu0 0.0
    %1250 = vmatprep.subr.mxu0 0.0
    %1251 = vmatpush1.msra.mxu0 0.0
    %1252 = vmatprep.subr.mxu0 0.0
    %1253 = vmatpush1.msra.mxu0 0.0
    %1254 = vmatprep.subr.mxu0 0.0
    %1255 = vmatpush1.msra.mxu0 0.0
    %1256 = vmatprep.subr.mxu0 0.0
    %1257 = vmatpush1.msra.mxu0 0.0
    %1258 = vmatprep.mubr.f32.mxu0 0.0
    %v1259 = vand.u32 %v62, 4294901760
    %v1260 = vsub.f32 %v62, %v1259
    %v1261 = vand.u32 %v1260, 4294901760
    %v1262 = vsub.f32 %v1260, %v1261
    %v1263 = vand.u32 %v1262, 4294901760
    %1264 = vmatmul.mubr.f32.gmra.mrb[0].mxu0 %v1263
    %v1265 = vpop.f32.mrb[0].mxu0
    %v1266 = vadd.f32 %v1154, %v1265
    %v1267 = vpop.f32.mrb[0].mxu0
    %1268 = vmatprep.mubr.f32.mxu0 0.0
    %v1269 = vand.u32 %v64, 4294901760
    %v1270 = vsub.f32 %v64, %v1269
    %v1271 = vand.u32 %v1270, 4294901760
    %v1272 = vsub.f32 %v1270, %v1271
    %v1273 = vand.u32 %v1272, 4294901760
    %1274 = vmatmul.mubr.f32.gmra.mrb[0].mxu0 %v1273
    %v1275 = vpop.f32.mrb[0].mxu0
    %v1276 = vadd.f32 %v1161, %v1275
    %v1277 = vpop.f32.mrb[0].mxu0
    %1278 = vmatprep.mubr.f32.mxu0 0.0
    %v1279 = vand.u32 %v82, 4294901760
    %v1280 = vsub.f32 %v82, %v1279
    %v1281 = vand.u32 %v1280, 4294901760
    %v1282 = vsub.f32 %v1280, %v1281
    %v1283 = vand.u32 %v1282, 4294901760
    %1284 = vmatmul.mubr.f32.gmra.mrb[0].mxu0 %v1283
    %v1285 = vpop.f32.mrb[0].mxu0
    %v1286 = vadd.f32 %v1168, %v1285
    %v1287 = vpop.f32.mrb[0].mxu0
    %1288 = vmatprep.mubr.f32.mxu0 0.0
    %v1289 = vand.u32 %v86, 4294901760
    %v1290 = vsub.f32 %v86, %v1289
    %v1291 = vand.u32 %v1290, 4294901760
    %v1292 = vsub.f32 %v1290, %v1291
    %v1293 = vand.u32 %v1292, 4294901760
    %1294 = vmatmul.mubr.f32.gmra.mrb[0].mxu0 %v1293
    %v1295 = vpop.f32.mrb[0].mxu0
    %v1296 = vadd.f32 %v1175, %v1295
    %v1297 = vpop.f32.mrb[0].mxu0
    %1298 = vdwg.mxu0
    %1299 = vmatprep.subr.mxu0 0.0
    %v1300 = vand.u32 %v125, 4294901760
    %v1301 = vsub.f32 %v125, %v1300
    %v1302 = vand.u32 %v1301, 4294901760
    %v1303 = vsub.f32 %v1301, %v1302
    %v1304 = vand.u32 %v1303, 4294901760
    %1305 = vmatpush1.msra.mxu0 %v1304
    %1306 = vmatprep.subr.mxu0 0.0
    %v1307 = vand.u32 %v126, 4294901760
    %v1308 = vsub.f32 %v126, %v1307
    %v1309 = vand.u32 %v1308, 4294901760
    %v1310 = vsub.f32 %v1308, %v1309
    %v1311 = vand.u32 %v1310, 4294901760
    %1312 = vmatpush1.msra.mxu0 %v1311
    %1313 = vmatprep.subr.mxu0 0.0
    %v1314 = vand.u32 %v127, 4294901760
    %v1315 = vsub.f32 %v127, %v1314
    %v1316 = vand.u32 %v1315, 4294901760
    %v1317 = vsub.f32 %v1315, %v1316
    %v1318 = vand.u32 %v1317, 4294901760
    %1319 = vmatpush1.msra.mxu0 %v1318
    %1320 = vmatprep.subr.mxu0 0.0
    %v1321 = vand.u32 %v128, 4294901760
    %v1322 = vsub.f32 %v128, %v1321
    %v1323 = vand.u32 %v1322, 4294901760
    %v1324 = vsub.f32 %v1322, %v1323
    %v1325 = vand.u32 %v1324, 4294901760
    %1326 = vmatpush1.msra.mxu0 %v1325
    %1327 = vmatprep.subr.mxu0 0.0
    %v1328 = vand.u32 %v129, 4294901760
    %v1329 = vsub.f32 %v129, %v1328
    %v1330 = vand.u32 %v1329, 4294901760
    %v1331 = vsub.f32 %v1329, %v1330
    %v1332 = vand.u32 %v1331, 4294901760
    %1333 = vmatpush1.msra.mxu0 %v1332
    %1334 = vmatprep.subr.mxu0 0.0
    %v1335 = vand.u32 %v130, 4294901760
    %v1336 = vsub.f32 %v130, %v1335
    %v1337 = vand.u32 %v1336, 4294901760
    %v1338 = vsub.f32 %v1336, %v1337
    %v1339 = vand.u32 %v1338, 4294901760
    %1340 = vmatpush1.msra.mxu0 %v1339
    %1341 = vmatprep.subr.mxu0 0.0
    %v1342 = vand.u32 %v131, 4294901760
    %v1343 = vsub.f32 %v131, %v1342
    %v1344 = vand.u32 %v1343, 4294901760
    %v1345 = vsub.f32 %v1343, %v1344
    %v1346 = vand.u32 %v1345, 4294901760
    %1347 = vmatpush1.msra.mxu0 %v1346
    %1348 = vmatprep.subr.mxu0 0.0
    %v1349 = vand.u32 %v132, 4294901760
    %v1350 = vsub.f32 %v132, %v1349
    %v1351 = vand.u32 %v1350, 4294901760
    %v1352 = vsub.f32 %v1350, %v1351
    %v1353 = vand.u32 %v1352, 4294901760
    %1354 = vmatpush1.msra.mxu0 %v1353
    %1355 = vmatprep.subr.mxu0 0.0
    %v1356 = vand.u32 %v133, 4294901760
    %v1357 = vsub.f32 %v133, %v1356
    %v1358 = vand.u32 %v1357, 4294901760
    %v1359 = vsub.f32 %v1357, %v1358
    %v1360 = vand.u32 %v1359, 4294901760
    %1361 = vmatpush1.msra.mxu0 %v1360
    %1362 = vmatprep.subr.mxu0 0.0
    %v1363 = vand.u32 %v134, 4294901760
    %v1364 = vsub.f32 %v134, %v1363
    %v1365 = vand.u32 %v1364, 4294901760
    %v1366 = vsub.f32 %v1364, %v1365
    %v1367 = vand.u32 %v1366, 4294901760
    %1368 = vmatpush1.msra.mxu0 %v1367
    %1369 = vmatprep.subr.mxu0 0.0
    %v1370 = vand.u32 %v135, 4294901760
    %v1371 = vsub.f32 %v135, %v1370
    %v1372 = vand.u32 %v1371, 4294901760
    %v1373 = vsub.f32 %v1371, %v1372
    %v1374 = vand.u32 %v1373, 4294901760
    %1375 = vmatpush1.msra.mxu0 %v1374
    %1376 = vmatprep.subr.mxu0 0.0
    %v1377 = vand.u32 %v136, 4294901760
    %v1378 = vsub.f32 %v136, %v1377
    %v1379 = vand.u32 %v1378, 4294901760
    %v1380 = vsub.f32 %v1378, %v1379
    %v1381 = vand.u32 %v1380, 4294901760
    %1382 = vmatpush1.msra.mxu0 %v1381
    %1383 = vmatprep.subr.mxu0 0.0
    %v1384 = vand.u32 %v137, 4294901760
    %v1385 = vsub.f32 %v137, %v1384
    %v1386 = vand.u32 %v1385, 4294901760
    %v1387 = vsub.f32 %v1385, %v1386
    %v1388 = vand.u32 %v1387, 4294901760
    %1389 = vmatpush1.msra.mxu0 %v1388
    %1390 = vmatprep.subr.mxu0 0.0
    %v1391 = vand.u32 %v138, 4294901760
    %v1392 = vsub.f32 %v138, %v1391
    %v1393 = vand.u32 %v1392, 4294901760
    %v1394 = vsub.f32 %v1392, %v1393
    %v1395 = vand.u32 %v1394, 4294901760
    %1396 = vmatpush1.msra.mxu0 %v1395
    %1397 = vmatprep.subr.mxu0 0.0
    %v1398 = vand.u32 %v139, 4294901760
    %v1399 = vsub.f32 %v139, %v1398
    %v1400 = vand.u32 %v1399, 4294901760
    %v1401 = vsub.f32 %v1399, %v1400
    %v1402 = vand.u32 %v1401, 4294901760
    %1403 = vmatpush1.msra.mxu0 %v1402
    %1404 = vmatprep.subr.mxu0 0.0
    %v1405 = vand.u32 %v140, 4294901760
    %v1406 = vsub.f32 %v140, %v1405
    %v1407 = vand.u32 %v1406, 4294901760
    %v1408 = vsub.f32 %v1406, %v1407
    %v1409 = vand.u32 %v1408, 4294901760
    %1410 = vmatpush1.msra.mxu0 %v1409
    %1411 = vmatprep.subr.mxu0 0.0
    %1412 = vmatpush1.msra.mxu0 0.0
    %1413 = vmatprep.subr.mxu0 0.0
    %1414 = vmatpush1.msra.mxu0 0.0
    %1415 = vmatprep.subr.mxu0 0.0
    %1416 = vmatpush1.msra.mxu0 0.0
    %1417 = vmatprep.subr.mxu0 0.0
    %1418 = vmatpush1.msra.mxu0 0.0
    %1419 = vmatprep.subr.mxu0 0.0
    %1420 = vmatpush1.msra.mxu0 0.0
    %1421 = vmatprep.subr.mxu0 0.0
    %1422 = vmatpush1.msra.mxu0 0.0
    %1423 = vmatprep.subr.mxu0 0.0
    %1424 = vmatpush1.msra.mxu0 0.0
    %1425 = vmatprep.subr.mxu0 0.0
    %1426 = vmatpush1.msra.mxu0 0.0
    %1427 = vmatprep.subr.mxu0 0.0
    %1428 = vmatpush1.msra.mxu0 0.0
    %1429 = vmatprep.subr.mxu0 0.0
    %1430 = vmatpush1.msra.mxu0 0.0
    %1431 = vmatprep.subr.mxu0 0.0
    %1432 = vmatpush1.msra.mxu0 0.0
    %1433 = vmatprep.subr.mxu0 0.0
    %1434 = vmatpush1.msra.mxu0 0.0
    %1435 = vmatprep.subr.mxu0 0.0
    %1436 = vmatpush1.msra.mxu0 0.0
    %1437 = vmatprep.subr.mxu0 0.0
    %1438 = vmatpush1.msra.mxu0 0.0
    %1439 = vmatprep.subr.mxu0 0.0
    %1440 = vmatpush1.msra.mxu0 0.0
    %1441 = vmatprep.subr.mxu0 0.0
    %1442 = vmatpush1.msra.mxu0 0.0
    %1443 = vmatprep.mubr.f32.mxu0 0.0
    %v1444 = vand.u32 %v62, 4294901760
    %1445 = vmatmul.mubr.f32.gmra.mrb[0].mxu0 %v1444
    %v1446 = vpop.f32.mrb[0].mxu0
    %v1447 = vadd.f32 %v1266, %v1446
    %v1448 = vpop.f32.mrb[0].mxu0
    %1449 = vmatprep.mubr.f32.mxu0 0.0
    %v1450 = vand.u32 %v64, 4294901760
    %1451 = vmatmul.mubr.f32.gmra.mrb[0].mxu0 %v1450
    %v1452 = vpop.f32.mrb[0].mxu0
    %v1453 = vadd.f32 %v1276, %v1452
    %v1454 = vpop.f32.mrb[0].mxu0
    %1455 = vmatprep.mubr.f32.mxu0 0.0
    %v1456 = vand.u32 %v82, 4294901760
    %1457 = vmatmul.mubr.f32.gmra.mrb[0].mxu0 %v1456
    %v1458 = vpop.f32.mrb[0].mxu0
    %v1459 = vadd.f32 %v1286, %v1458
    %v1460 = vpop.f32.mrb[0].mxu0
    %1461 = vmatprep.mubr.f32.mxu0 0.0
    %v1462 = vand.u32 %v86, 4294901760
    %1463 = vmatmul.mubr.f32.gmra.mrb[0].mxu0 %v1462
    %v1464 = vpop.f32.mrb[0].mxu0
    %v1465 = vadd.f32 %v1296, %v1464
    %v1466 = vpop.f32.mrb[0].mxu0
    %1467 = vdwg.mxu0
    %1468 = vmatprep.subr.mxu0 0.0
    %v1469 = vand.u32 %v125, 4294901760
    %v1470 = vsub.f32 %v125, %v1469
    %1471 = vmatpush1.msra.mxu0 %v1470
    %1472 = vmatprep.subr.mxu0 0.0
    %v1473 = vand.u32 %v126, 4294901760
    %v1474 = vsub.f32 %v126, %v1473
    %1475 = vmatpush1.msra.mxu0 %v1474
    %1476 = vmatprep.subr.mxu0 0.0
    %v1477 = vand.u32 %v127, 4294901760
    %v1478 = vsub.f32 %v127, %v1477
    %1479 = vmatpush1.msra.mxu0 %v1478
    %1480 = vmatprep.subr.mxu0 0.0
    %v1481 = vand.u32 %v128, 4294901760
    %v1482 = vsub.f32 %v128, %v1481
    %1483 = vmatpush1.msra.mxu0 %v1482
    %1484 = vmatprep.subr.mxu0 0.0
    %v1485 = vand.u32 %v129, 4294901760
    %v1486 = vsub.f32 %v129, %v1485
    %1487 = vmatpush1.msra.mxu0 %v1486
    %1488 = vmatprep.subr.mxu0 0.0
    %v1489 = vand.u32 %v130, 4294901760
    %v1490 = vsub.f32 %v130, %v1489
    %1491 = vmatpush1.msra.mxu0 %v1490
    %1492 = vmatprep.subr.mxu0 0.0
    %v1493 = vand.u32 %v131, 4294901760
    %v1494 = vsub.f32 %v131, %v1493
    %1495 = vmatpush1.msra.mxu0 %v1494
    %1496 = vmatprep.subr.mxu0 0.0
    %v1497 = vand.u32 %v132, 4294901760
    %v1498 = vsub.f32 %v132, %v1497
    %1499 = vmatpush1.msra.mxu0 %v1498
    %1500 = vmatprep.subr.mxu0 0.0
    %v1501 = vand.u32 %v133, 4294901760
    %v1502 = vsub.f32 %v133, %v1501
    %1503 = vmatpush1.msra.mxu0 %v1502
    %1504 = vmatprep.subr.mxu0 0.0
    %v1505 = vand.u32 %v134, 4294901760
    %v1506 = vsub.f32 %v134, %v1505
    %1507 = vmatpush1.msra.mxu0 %v1506
    %1508 = vmatprep.subr.mxu0 0.0
    %v1509 = vand.u32 %v135, 4294901760
    %v1510 = vsub.f32 %v135, %v1509
    %1511 = vmatpush1.msra.mxu0 %v1510
    %1512 = vmatprep.subr.mxu0 0.0
    %v1513 = vand.u32 %v136, 4294901760
    %v1514 = vsub.f32 %v136, %v1513
    %1515 = vmatpush1.msra.mxu0 %v1514
    %1516 = vmatprep.subr.mxu0 0.0
    %v1517 = vand.u32 %v137, 4294901760
    %v1518 = vsub.f32 %v137, %v1517
    %1519 = vmatpush1.msra.mxu0 %v1518
    %1520 = vmatprep.subr.mxu0 0.0
    %v1521 = vand.u32 %v138, 4294901760
    %v1522 = vsub.f32 %v138, %v1521
    %1523 = vmatpush1.msra.mxu0 %v1522
    %1524 = vmatprep.subr.mxu0 0.0
    %v1525 = vand.u32 %v139, 4294901760
    %v1526 = vsub.f32 %v139, %v1525
    %1527 = vmatpush1.msra.mxu0 %v1526
    %1528 = vmatprep.subr.mxu0 0.0
    %v1529 = vand.u32 %v140, 4294901760
    %v1530 = vsub.f32 %v140, %v1529
    %1531 = vmatpush1.msra.mxu0 %v1530
    %1532 = vmatprep.subr.mxu0 0.0
    %1533 = vmatpush1.msra.mxu0 0.0
    %1534 = vmatprep.subr.mxu0 0.0
    %1535 = vmatpush1.msra.mxu0 0.0
    %1536 = vmatprep.subr.mxu0 0.0
    %1537 = vmatpush1.msra.mxu0 0.0
    %1538 = vmatprep.subr.mxu0 0.0
    %1539 = vmatpush1.msra.mxu0 0.0
    %1540 = vmatprep.subr.mxu0 0.0
    %1541 = vmatpush1.msra.mxu0 0.0
    %1542 = vmatprep.subr.mxu0 0.0
    %1543 = vmatpush1.msra.mxu0 0.0
    %1544 = vmatprep.subr.mxu0 0.0
    %1545 = vmatpush1.msra.mxu0 0.0
    %1546 = vmatprep.subr.mxu0 0.0
    %1547 = vmatpush1.msra.mxu0 0.0
    %1548 = vmatprep.subr.mxu0 0.0
    %1549 = vmatpush1.msra.mxu0 0.0
    %1550 = vmatprep.subr.mxu0 0.0
    %1551 = vmatpush1.msra.mxu0 0.0
    %1552 = vmatprep.subr.mxu0 0.0
    %1553 = vmatpush1.msra.mxu0 0.0
    %1554 = vmatprep.subr.mxu0 0.0
    %1555 = vmatpush1.msra.mxu0 0.0
    %1556 = vmatprep.subr.mxu0 0.0
    %1557 = vmatpush1.msra.mxu0 0.0
    %1558 = vmatprep.subr.mxu0 0.0
    %1559 = vmatpush1.msra.mxu0 0.0
    %1560 = vmatprep.subr.mxu0 0.0
    %1561 = vmatpush1.msra.mxu0 0.0
    %1562 = vmatprep.subr.mxu0 0.0
    %1563 = vmatpush1.msra.mxu0 0.0
    %1564 = vmatprep.mubr.f32.mxu0 0.0
    %v1565 = vand.u32 %v62, 4294901760
    %v1566 = vsub.f32 %v62, %v1565
    %1567 = vmatmul.mubr.f32.gmra.mrb[0].mxu0 %v1566
    %v1568 = vpop.f32.mrb[0].mxu0
    %v1569 = vadd.f32 %v1447, %v1568
    %v1570 = vpop.f32.mrb[0].mxu0
    %1571 = vmatprep.mubr.f32.mxu0 0.0
    %v1572 = vand.u32 %v64, 4294901760
    %v1573 = vsub.f32 %v64, %v1572
    %1574 = vmatmul.mubr.f32.gmra.mrb[0].mxu0 %v1573
    %v1575 = vpop.f32.mrb[0].mxu0
    %v1576 = vadd.f32 %v1453, %v1575
    %v1577 = vpop.f32.mrb[0].mxu0
    %1578 = vmatprep.mubr.f32.mxu0 0.0
    %v1579 = vand.u32 %v82, 4294901760
    %v1580 = vsub.f32 %v82, %v1579
    %1581 = vmatmul.mubr.f32.gmra.mrb[0].mxu0 %v1580
    %v1582 = vpop.f32.mrb[0].mxu0
    %v1583 = vadd.f32 %v1459, %v1582
    %v1584 = vpop.f32.mrb[0].mxu0
    %1585 = vmatprep.mubr.f32.mxu0 0.0
    %v1586 = vand.u32 %v86, 4294901760
    %v1587 = vsub.f32 %v86, %v1586
    %1588 = vmatmul.mubr.f32.gmra.mrb[0].mxu0 %v1587
    %v1589 = vpop.f32.mrb[0].mxu0
    %v1590 = vadd.f32 %v1465, %v1589
    %v1591 = vpop.f32.mrb[0].mxu0
    %1592 = vdwg.mxu0
    %1593 = vmatprep.subr.mxu0 0.0
    %v1594 = vand.u32 %v125, 4294901760
    %1595 = vmatpush1.msra.mxu0 %v1594
    %1596 = vmatprep.subr.mxu0 0.0
    %v1597 = vand.u32 %v126, 4294901760
    %1598 = vmatpush1.msra.mxu0 %v1597
    %1599 = vmatprep.subr.mxu0 0.0
    %v1600 = vand.u32 %v127, 4294901760
    %1601 = vmatpush1.msra.mxu0 %v1600
    %1602 = vmatprep.subr.mxu0 0.0
    %v1603 = vand.u32 %v128, 4294901760
    %1604 = vmatpush1.msra.mxu0 %v1603
    %1605 = vmatprep.subr.mxu0 0.0
    %v1606 = vand.u32 %v129, 4294901760
    %1607 = vmatpush1.msra.mxu0 %v1606
    %1608 = vmatprep.subr.mxu0 0.0
    %v1609 = vand.u32 %v130, 4294901760
    %1610 = vmatpush1.msra.mxu0 %v1609
    %1611 = vmatprep.subr.mxu0 0.0
    %v1612 = vand.u32 %v131, 4294901760
    %1613 = vmatpush1.msra.mxu0 %v1612
    %1614 = vmatprep.subr.mxu0 0.0
    %v1615 = vand.u32 %v132, 4294901760
    %1616 = vmatpush1.msra.mxu0 %v1615
    %1617 = vmatprep.subr.mxu0 0.0
    %v1618 = vand.u32 %v133, 4294901760
    %1619 = vmatpush1.msra.mxu0 %v1618
    %1620 = vmatprep.subr.mxu0 0.0
    %v1621 = vand.u32 %v134, 4294901760
    %1622 = vmatpush1.msra.mxu0 %v1621
    %1623 = vmatprep.subr.mxu0 0.0
    %v1624 = vand.u32 %v135, 4294901760
    %1625 = vmatpush1.msra.mxu0 %v1624
    %1626 = vmatprep.subr.mxu0 0.0
    %v1627 = vand.u32 %v136, 4294901760
    %1628 = vmatpush1.msra.mxu0 %v1627
    %1629 = vmatprep.subr.mxu0 0.0
    %v1630 = vand.u32 %v137, 4294901760
    %1631 = vmatpush1.msra.mxu0 %v1630
    %1632 = vmatprep.subr.mxu0 0.0
    %v1633 = vand.u32 %v138, 4294901760
    %1634 = vmatpush1.msra.mxu0 %v1633
    %1635 = vmatprep.subr.mxu0 0.0
    %v1636 = vand.u32 %v139, 4294901760
    %1637 = vmatpush1.msra.mxu0 %v1636
    %1638 = vmatprep.subr.mxu0 0.0
    %v1639 = vand.u32 %v140, 4294901760
    %1640 = vmatpush1.msra.mxu0 %v1639
    %1641 = vmatprep.subr.mxu0 0.0
    %1642 = vmatpush1.msra.mxu0 0.0
    %1643 = vmatprep.subr.mxu0 0.0
    %1644 = vmatpush1.msra.mxu0 0.0
    %1645 = vmatprep.subr.mxu0 0.0
    %1646 = vmatpush1.msra.mxu0 0.0
    %1647 = vmatprep.subr.mxu0 0.0
    %1648 = vmatpush1.msra.mxu0 0.0
    %1649 = vmatprep.subr.mxu0 0.0
    %1650 = vmatpush1.msra.mxu0 0.0
    %1651 = vmatprep.subr.mxu0 0.0
    %1652 = vmatpush1.msra.mxu0 0.0
    %1653 = vmatprep.subr.mxu0 0.0
    %1654 = vmatpush1.msra.mxu0 0.0
    %1655 = vmatprep.subr.mxu0 0.0
    %1656 = vmatpush1.msra.mxu0 0.0
    %1657 = vmatprep.subr.mxu0 0.0
    %1658 = vmatpush1.msra.mxu0 0.0
    %1659 = vmatprep.subr.mxu0 0.0
    %1660 = vmatpush1.msra.mxu0 0.0
    %1661 = vmatprep.subr.mxu0 0.0
    %1662 = vmatpush1.msra.mxu0 0.0
    %1663 = vmatprep.subr.mxu0 0.0
    %1664 = vmatpush1.msra.mxu0 0.0
    %1665 = vmatprep.subr.mxu0 0.0
    %1666 = vmatpush1.msra.mxu0 0.0
    %1667 = vmatprep.subr.mxu0 0.0
    %1668 = vmatpush1.msra.mxu0 0.0
    %1669 = vmatprep.subr.mxu0 0.0
    %1670 = vmatpush1.msra.mxu0 0.0
    %1671 = vmatprep.subr.mxu0 0.0
    %1672 = vmatpush1.msra.mxu0 0.0
    %1673 = vmatprep.mubr.f32.mxu0 0.0
    %v1674 = vand.u32 %v62, 4294901760
    %v1675 = vsub.f32 %v62, %v1674
    %v1676 = vand.u32 %v1675, 4294901760
    %1677 = vmatmul.mubr.f32.gmra.mrb[0].mxu0 %v1676
    %v1678 = vpop.f32.mrb[0].mxu0
    %v1679 = vadd.f32 %v1569, %v1678
    %v1680 = vpop.f32.mrb[0].mxu0
    %1681 = vmatprep.mubr.f32.mxu0 0.0
    %v1682 = vand.u32 %v64, 4294901760
    %v1683 = vsub.f32 %v64, %v1682
    %v1684 = vand.u32 %v1683, 4294901760
    %1685 = vmatmul.mubr.f32.gmra.mrb[0].mxu0 %v1684
    %v1686 = vpop.f32.mrb[0].mxu0
    %v1687 = vadd.f32 %v1576, %v1686
    %v1688 = vpop.f32.mrb[0].mxu0
    %1689 = vmatprep.mubr.f32.mxu0 0.0
    %v1690 = vand.u32 %v82, 4294901760
    %v1691 = vsub.f32 %v82, %v1690
    %v1692 = vand.u32 %v1691, 4294901760
    %1693 = vmatmul.mubr.f32.gmra.mrb[0].mxu0 %v1692
    %v1694 = vpop.f32.mrb[0].mxu0
    %v1695 = vadd.f32 %v1583, %v1694
    %v1696 = vpop.f32.mrb[0].mxu0
    %1697 = vmatprep.mubr.f32.mxu0 0.0
    %v1698 = vand.u32 %v86, 4294901760
    %v1699 = vsub.f32 %v86, %v1698
    %v1700 = vand.u32 %v1699, 4294901760
    %1701 = vmatmul.mubr.f32.gmra.mrb[0].mxu0 %v1700
    %v1702 = vpop.f32.mrb[0].mxu0
    %v1703 = vadd.f32 %v1590, %v1702
    %v1704 = vpop.f32.mrb[0].mxu0
    %1705 = vdwg.mxu0
    %1706 = vmatprep.subr.mxu0 0.0
    %v1707 = vand.u32 %v125, 4294901760
    %v1708 = vsub.f32 %v125, %v1707
    %v1709 = vand.u32 %v1708, 4294901760
    %1710 = vmatpush1.msra.mxu0 %v1709
    %1711 = vmatprep.subr.mxu0 0.0
    %v1712 = vand.u32 %v126, 4294901760
    %v1713 = vsub.f32 %v126, %v1712
    %v1714 = vand.u32 %v1713, 4294901760
    %1715 = vmatpush1.msra.mxu0 %v1714
    %1716 = vmatprep.subr.mxu0 0.0
    %v1717 = vand.u32 %v127, 4294901760
    %v1718 = vsub.f32 %v127, %v1717
    %v1719 = vand.u32 %v1718, 4294901760
    %1720 = vmatpush1.msra.mxu0 %v1719
    %1721 = vmatprep.subr.mxu0 0.0
    %v1722 = vand.u32 %v128, 4294901760
    %v1723 = vsub.f32 %v128, %v1722
    %v1724 = vand.u32 %v1723, 4294901760
    %1725 = vmatpush1.msra.mxu0 %v1724
    %1726 = vmatprep.subr.mxu0 0.0
    %v1727 = vand.u32 %v129, 4294901760
    %v1728 = vsub.f32 %v129, %v1727
    %v1729 = vand.u32 %v1728, 4294901760
    %1730 = vmatpush1.msra.mxu0 %v1729
    %1731 = vmatprep.subr.mxu0 0.0
    %v1732 = vand.u32 %v130, 4294901760
    %v1733 = vsub.f32 %v130, %v1732
    %v1734 = vand.u32 %v1733, 4294901760
    %1735 = vmatpush1.msra.mxu0 %v1734
    %1736 = vmatprep.subr.mxu0 0.0
    %v1737 = vand.u32 %v131, 4294901760
    %v1738 = vsub.f32 %v131, %v1737
    %v1739 = vand.u32 %v1738, 4294901760
    %1740 = vmatpush1.msra.mxu0 %v1739
    %1741 = vmatprep.subr.mxu0 0.0
    %v1742 = vand.u32 %v132, 4294901760
    %v1743 = vsub.f32 %v132, %v1742
    %v1744 = vand.u32 %v1743, 4294901760
    %1745 = vmatpush1.msra.mxu0 %v1744
    %1746 = vmatprep.subr.mxu0 0.0
    %v1747 = vand.u32 %v133, 4294901760
    %v1748 = vsub.f32 %v133, %v1747
    %v1749 = vand.u32 %v1748, 4294901760
    %1750 = vmatpush1.msra.mxu0 %v1749
    %1751 = vmatprep.subr.mxu0 0.0
    %v1752 = vand.u32 %v134, 4294901760
    %v1753 = vsub.f32 %v134, %v1752
    %v1754 = vand.u32 %v1753, 4294901760
    %1755 = vmatpush1.msra.mxu0 %v1754
    %1756 = vmatprep.subr.mxu0 0.0
    %v1757 = vand.u32 %v135, 4294901760
    %v1758 = vsub.f32 %v135, %v1757
    %v1759 = vand.u32 %v1758, 4294901760
    %1760 = vmatpush1.msra.mxu0 %v1759
    %1761 = vmatprep.subr.mxu0 0.0
    %v1762 = vand.u32 %v136, 4294901760
    %v1763 = vsub.f32 %v136, %v1762
    %v1764 = vand.u32 %v1763, 4294901760
    %1765 = vmatpush1.msra.mxu0 %v1764
    %1766 = vmatprep.subr.mxu0 0.0
    %v1767 = vand.u32 %v137, 4294901760
    %v1768 = vsub.f32 %v137, %v1767
    %v1769 = vand.u32 %v1768, 4294901760
    %1770 = vmatpush1.msra.mxu0 %v1769
    %1771 = vmatprep.subr.mxu0 0.0
    %v1772 = vand.u32 %v138, 4294901760
    %v1773 = vsub.f32 %v138, %v1772
    %v1774 = vand.u32 %v1773, 4294901760
    %1775 = vmatpush1.msra.mxu0 %v1774
    %1776 = vmatprep.subr.mxu0 0.0
    %v1777 = vand.u32 %v139, 4294901760
    %v1778 = vsub.f32 %v139, %v1777
    %v1779 = vand.u32 %v1778, 4294901760
    %1780 = vmatpush1.msra.mxu0 %v1779
    %1781 = vmatprep.subr.mxu0 0.0
    %v1782 = vand.u32 %v140, 4294901760
    %v1783 = vsub.f32 %v140, %v1782
    %v1784 = vand.u32 %v1783, 4294901760
    %1785 = vmatpush1.msra.mxu0 %v1784
    %1786 = vmatprep.subr.mxu0 0.0
    %1787 = vmatpush1.msra.mxu0 0.0
    %1788 = vmatprep.subr.mxu0 0.0
    %1789 = vmatpush1.msra.mxu0 0.0
    %1790 = vmatprep.subr.mxu0 0.0
    %1791 = vmatpush1.msra.mxu0 0.0
    %1792 = vmatprep.subr.mxu0 0.0
    %1793 = vmatpush1.msra.mxu0 0.0
    %1794 = vmatprep.subr.mxu0 0.0
    %1795 = vmatpush1.msra.mxu0 0.0
    %1796 = vmatprep.subr.mxu0 0.0
    %1797 = vmatpush1.msra.mxu0 0.0
    %1798 = vmatprep.subr.mxu0 0.0
    %1799 = vmatpush1.msra.mxu0 0.0
    %1800 = vmatprep.subr.mxu0 0.0
    %1801 = vmatpush1.msra.mxu0 0.0
    %1802 = vmatprep.subr.mxu0 0.0
    %1803 = vmatpush1.msra.mxu0 0.0
    %1804 = vmatprep.subr.mxu0 0.0
    %1805 = vmatpush1.msra.mxu0 0.0
    %1806 = vmatprep.subr.mxu0 0.0
    %1807 = vmatpush1.msra.mxu0 0.0
    %1808 = vmatprep.subr.mxu0 0.0
    %1809 = vmatpush1.msra.mxu0 0.0
    %1810 = vmatprep.subr.mxu0 0.0
    %1811 = vmatpush1.msra.mxu0 0.0
    %1812 = vmatprep.subr.mxu0 0.0
    %1813 = vmatpush1.msra.mxu0 0.0
    %1814 = vmatprep.subr.mxu0 0.0
    %1815 = vmatpush1.msra.mxu0 0.0
    %1816 = vmatprep.subr.mxu0 0.0
    %1817 = vmatpush1.msra.mxu0 0.0
    %1818 = vmatprep.mubr.f32.mxu0 0.0
    %v1819 = vand.u32 %v62, 4294901760
    %1820 = vmatmul.mubr.f32.gmra.mrb[0].mxu0 %v1819
    %v1821 = vpop.f32.mrb[0].mxu0
    %v1822 = vadd.f32 %v1679, %v1821
    %v1823 = vpop.f32.mrb[0].mxu0
    %1824 = vmatprep.mubr.f32.mxu0 0.0
    %v1825 = vand.u32 %v64, 4294901760
    %1826 = vmatmul.mubr.f32.gmra.mrb[0].mxu0 %v1825
    %v1827 = vpop.f32.mrb[0].mxu0
    %v1828 = vadd.f32 %v1687, %v1827
    %v1829 = vpop.f32.mrb[0].mxu0
    %1830 = vmatprep.mubr.f32.mxu0 0.0
    %v1831 = vand.u32 %v82, 4294901760
    %1832 = vmatmul.mubr.f32.gmra.mrb[0].mxu0 %v1831
    %v1833 = vpop.f32.mrb[0].mxu0
    %v1834 = vadd.f32 %v1695, %v1833
    %v1835 = vpop.f32.mrb[0].mxu0
    %1836 = vmatprep.mubr.f32.mxu0 0.0
    %v1837 = vand.u32 %v86, 4294901760
    %1838 = vmatmul.mubr.f32.gmra.mrb[0].mxu0 %v1837
    %v1839 = vpop.f32.mrb[0].mxu0
    %v1840 = vadd.f32 %v1703, %v1839
    %v1841 = vpop.f32.mrb[0].mxu0
    %1842 = vdwg.mxu0
    %1843 = vmatprep.subr.mxu0 0.0
    %v1844 = vand.u32 %v125, 4294901760
    %1845 = vmatpush1.msra.mxu0 %v1844
    %1846 = vmatprep.subr.mxu0 0.0
    %v1847 = vand.u32 %v126, 4294901760
    %1848 = vmatpush1.msra.mxu0 %v1847
    %1849 = vmatprep.subr.mxu0 0.0
    %v1850 = vand.u32 %v127, 4294901760
    %1851 = vmatpush1.msra.mxu0 %v1850
    %1852 = vmatprep.subr.mxu0 0.0
    %v1853 = vand.u32 %v128, 4294901760
    %1854 = vmatpush1.msra.mxu0 %v1853
    %1855 = vmatprep.subr.mxu0 0.0
    %v1856 = vand.u32 %v129, 4294901760
    %1857 = vmatpush1.msra.mxu0 %v1856
    %1858 = vmatprep.subr.mxu0 0.0
    %v1859 = vand.u32 %v130, 4294901760
    %1860 = vmatpush1.msra.mxu0 %v1859
    %1861 = vmatprep.subr.mxu0 0.0
    %v1862 = vand.u32 %v131, 4294901760
    %1863 = vmatpush1.msra.mxu0 %v1862
    %1864 = vmatprep.subr.mxu0 0.0
    %v1865 = vand.u32 %v132, 4294901760
    %1866 = vmatpush1.msra.mxu0 %v1865
    %1867 = vmatprep.subr.mxu0 0.0
    %v1868 = vand.u32 %v133, 4294901760
    %1869 = vmatpush1.msra.mxu0 %v1868
    %1870 = vmatprep.subr.mxu0 0.0
    %v1871 = vand.u32 %v134, 4294901760
    %1872 = vmatpush1.msra.mxu0 %v1871
    %1873 = vmatprep.subr.mxu0 0.0
    %v1874 = vand.u32 %v135, 4294901760
    %1875 = vmatpush1.msra.mxu0 %v1874
    %1876 = vmatprep.subr.mxu0 0.0
    %v1877 = vand.u32 %v136, 4294901760
    %1878 = vmatpush1.msra.mxu0 %v1877
    %1879 = vmatprep.subr.mxu0 0.0
    %v1880 = vand.u32 %v137, 4294901760
    %1881 = vmatpush1.msra.mxu0 %v1880
    %1882 = vmatprep.subr.mxu0 0.0
    %v1883 = vand.u32 %v138, 4294901760
    %1884 = vmatpush1.msra.mxu0 %v1883
    %1885 = vmatprep.subr.mxu0 0.0
    %v1886 = vand.u32 %v139, 4294901760
    %1887 = vmatpush1.msra.mxu0 %v1886
    %1888 = vmatprep.subr.mxu0 0.0
    %v1889 = vand.u32 %v140, 4294901760
    %1890 = vmatpush1.msra.mxu0 %v1889
    %1891 = vmatprep.subr.mxu0 0.0
    %1892 = vmatpush1.msra.mxu0 0.0
    %1893 = vmatprep.subr.mxu0 0.0
    %1894 = vmatpush1.msra.mxu0 0.0
    %1895 = vmatprep.subr.mxu0 0.0
    %1896 = vmatpush1.msra.mxu0 0.0
    %1897 = vmatprep.subr.mxu0 0.0
    %1898 = vmatpush1.msra.mxu0 0.0
    %1899 = vmatprep.subr.mxu0 0.0
    %1900 = vmatpush1.msra.mxu0 0.0
    %1901 = vmatprep.subr.mxu0 0.0
    %1902 = vmatpush1.msra.mxu0 0.0
    %1903 = vmatprep.subr.mxu0 0.0
    %1904 = vmatpush1.msra.mxu0 0.0
    %1905 = vmatprep.subr.mxu0 0.0
    %1906 = vmatpush1.msra.mxu0 0.0
    %1907 = vmatprep.subr.mxu0 0.0
    %1908 = vmatpush1.msra.mxu0 0.0
    %1909 = vmatprep.subr.mxu0 0.0
    %1910 = vmatpush1.msra.mxu0 0.0
    %1911 = vmatprep.subr.mxu0 0.0
    %1912 = vmatpush1.msra.mxu0 0.0
    %1913 = vmatprep.subr.mxu0 0.0
    %1914 = vmatpush1.msra.mxu0 0.0
    %1915 = vmatprep.subr.mxu0 0.0
    %1916 = vmatpush1.msra.mxu0 0.0
    %1917 = vmatprep.subr.mxu0 0.0
    %1918 = vmatpush1.msra.mxu0 0.0
    %1919 = vmatprep.subr.mxu0 0.0
    %1920 = vmatpush1.msra.mxu0 0.0
    %1921 = vmatprep.subr.mxu0 0.0
    %1922 = vmatpush1.msra.mxu0 0.0
    %1923 = vmatprep.mubr.f32.mxu0 0.0
    %v1924 = vand.u32 %v62, 4294901760
    %1925 = vmatmul.mubr.f32.gmra.mrb[0].mxu0 %v1924
    %v1926 = vpop.f32.mrb[0].mxu0
    %v1927 = vadd.f32 %v1822, %v1926
    %v1928 = vpop.f32.mrb[0].mxu0
    %1929 = vmatprep.mubr.f32.mxu0 0.0
    %v1930 = vand.u32 %v64, 4294901760
    %1931 = vmatmul.mubr.f32.gmra.mrb[0].mxu0 %v1930
    %v1932 = vpop.f32.mrb[0].mxu0
    %v1933 = vadd.f32 %v1828, %v1932
    %v1934 = vpop.f32.mrb[0].mxu0
    %1935 = vmatprep.mubr.f32.mxu0 0.0
    %v1936 = vand.u32 %v82, 4294901760
    %1937 = vmatmul.mubr.f32.gmra.mrb[0].mxu0 %v1936
    %v1938 = vpop.f32.mrb[0].mxu0
    %v1939 = vadd.f32 %v1834, %v1938
    %v1940 = vpop.f32.mrb[0].mxu0
    %1941 = vmatprep.mubr.f32.mxu0 0.0
    %v1942 = vand.u32 %v86, 4294901760
    %1943 = vmatmul.mubr.f32.gmra.mrb[0].mxu0 %v1942
    %v1944 = vpop.f32.mrb[0].mxu0
    %v1945 = vadd.f32 %v1840, %v1944
    %v1946 = vpop.f32.mrb[0].mxu0
    %1947 = vdwg.mxu0
    %v1948 = vxor.u32 %v1927, 2147483648
    %v1949 = vxor.u32 %v1933, 2147483648
    %v1950 = vxor.u32 %v1939, 2147483648
    %v1951 = vxor.u32 %v1945, 2147483648
    %v1952 = vmul.f32 %v1948, 1.442695
    %v1953 = vpow.pop %v1952
    %v1954 = vmul.f32 %v1949, 1.442695
    %v1955 = vpow.pop %v1954
    %v1956 = vmul.f32 %v1950, 1.442695
    %v1957 = vpow.pop %v1956
    %v1958 = vmul.f32 %v1951, 1.442695
    %v1959 = vpow.pop %v1958
    %v1960 = vadd.f32 %v1953, 1.0
    %v1961 = vadd.f32 %v1955, 1.0
    %v1962 = vadd.f32 %v1957, 1.0
    %v1963 = vadd.f32 %v1959, 1.0
    %v1964 = vrcp.pop %v1960
    %v1965 = vmul.f32 1.0, %v1964
    %v1966 = vrcp.pop %v1961
    %v1967 = vmul.f32 1.0, %v1966
    %v1968 = vrcp.pop %v1962
    %v1969 = vmul.f32 1.0, %v1968
    %v1970 = vrcp.pop %v1963
    %v1971 = vmul.f32 1.0, %v1970
    %v1972 = vmul.f32 %v1927, %v1965
    %v1973 = vmul.f32 %v1933, %v1967
    %v1974 = vmul.f32 %v1939, %v1969
    %v1975 = vmul.f32 %v1945, %v1971
    %1976 = vst [vmem:[#allocation7] sm:$0xff] %v1972
    %1977 = vst [vmem:[#allocation7 + $0x8] sm:$0xff] %v1973
    %1978 = vst [vmem:[#allocation7 + $0x10] sm:$0xff] %v1974
    %1979 = vst [vmem:[#allocation7 + $0x18] sm:$0xff] %v1975
    // Predicated region
    $region22: #{tpu_custom_call.1} parent=1 // pred_check
      _
    $region23: #{tpu_custom_call.1} parent=1 // pred_check_branch
      %1981 = sbr.rel (0) target = $region25
    $region24: #{tpu_custom_call.1} parent=1 // pred_region
      %s1983 = ssub.s32 512, 512
      %1984 = vsyncadd [#allocation4], %s1983
      %s1985 = sshll.u32 [#allocation7], 4
      %s1986 = int_to_ptr.vmem [resolvable:$true] %s1985
      %1991 = dma.vmem_to_hbm [thread:$0]  %s1986, 512, %s3, [#allocation4], 128, 128, 8
    $region25: #{tpu_custom_call.1} parent=1 // pred_fallthru
      _
    // Predicated region
    $region26: #{tpu_custom_call.1} parent=1 // pred_check
      _
    $region27: #{tpu_custom_call.1} parent=1 // pred_check_branch
      %1993 = sbr.rel (0) target = $region29
    $region28: #{tpu_custom_call.1} parent=1 // pred_region
      %1994 = dma.done [#allocation4], 512
    $region29: #{tpu_custom_call.1} parent=1 // pred_fallthru
      _
    %1995 = vsyncpa [#allocation3], 1
    %1996 = vsyncpa [#allocation6], 1
    %1997 = vsyncpa [#allocation4], 1

</llo_original>
